<compile_context>
chip_gen: v7x
topology: tpu7x:2x2x1
jax: 0.10.0
libtpu: 0.0.40
codegen_flags: <defaults>
</compile_context>

<pallas_src>
import functools
import math

import jax
import jax.numpy as jnp
from jax import lax
from jax.experimental import pallas as pl
from jax.experimental.pallas import tpu as pltpu


def _vit_rx_kernel(x_ref, wt_ref, pb_ref, out_ref, *, precision):
    """One row tile: fused (gate-scaled v_proj->out_proj) GEMM + residual + LayerNorm."""
    x = x_ref[...]                         # (TN, E) activations, streaming dtype
    w = wt_ref[...]                        # (E, E)  pre-transposed, gate-folded weight
    pb = pb_ref[...]                       # (8, E)  packed f32 per-feature params

    x_mm = x if x.dtype == w.dtype else x.astype(w.dtype)
    acc = jnp.dot(x_mm, w, preferred_element_type=jnp.float32, precision=precision)

    xf = x.astype(jnp.float32)
    b_g = pb[0:1, :]                       # g * (b_v @ W_o^T + b_o)
    omg = pb[1:2, :]                       # (1 - g), broadcast over features
    gamma = pb[2:3, :]
    beta = pb[3:4, :]

    # g*attn_out + (1-g)*x   (all f32 on the VPU; gate already folded into w/b).
    res = acc + b_g + omg * xf

    # One-pass LayerNorm stats: mean = s/E, var = ss/E - mean^2  (biased, eps=1e-5).
    inv_e = 1.0 / res.shape[-1]
    s = jnp.sum(res, axis=-1, keepdims=True)
    ss = jnp.sum(res * res, axis=-1, keepdims=True)
    mean = s * inv_e
    var = ss * inv_e - mean * mean
    inv = lax.rsqrt(var + 1e-5)
    out_ref[...] = ((res - mean) * (inv * gamma) + beta).astype(out_ref.dtype)


def prepare_vit_rx_params(params, *, matmul_dtype=jnp.float32):
    """One-time weight folding (hoist out of the per-forward path; cache the result)."""
    (wqkv, b_q, b_k, b_v, w_o, b_o, gamma, beta, gate, num_heads) = params
    del b_q, b_k, num_heads           # provably unused: softmax over a single key == 1
    f32 = jnp.float32
    hp = lax.Precision.HIGHEST
    E = w_o.shape[0]

    w_v = wqkv[2 * E:3 * E, :].astype(f32)                                  # (E, E)
    w_fused = jnp.dot(w_o.astype(f32), w_v, precision=hp)                   # out_proj∘v_proj
    b_fused = (jnp.dot(b_v.reshape(1, E).astype(f32), w_o.T.astype(f32), precision=hp)
               + b_o.reshape(1, E).astype(f32))                             # (1, E)
    g = gate.reshape(()).astype(f32)

    # Gate folded into weight/bias; pre-transposed so the kernel does lane-dense x @ W_t.
    w_fused_t = (g * w_fused).T.astype(matmul_dtype)                        # (E, E)

    # Pack bias / (1-g) / gamma / beta into a single (8, E) f32 block (one DMA, one spec).
    pb = jnp.zeros((8, E), f32)
    pb = pb.at[0, :].set((g * b_fused).reshape(E))
    pb = pb.at[1, :].set(jnp.full((E,), 1.0, f32) - g)
    pb = pb.at[2, :].set(gamma.reshape(E).astype(f32))
    pb = pb.at[3, :].set(beta.reshape(E).astype(f32))
    return w_fused_t, pb


def vit_transformer_rx(offset_feature, ref_feature, prepared, *, tile_n=512,
                       precision=None, out_dtype=None, vmem_limit_bytes=None):
    """ViTTransformerRX forward as a single tiled Pallas call (no pad/slice passes).

    VMEM budget (choose tile_n accordingly, esp. on v7x's 64 MiB / 32 MiB scoped):
        2*tn*E*in_dsize + 2*tn*E*out_dsize + E*E*w_dsize  <~  24-28 MiB,
    and keep grid >= 2 steps on v7x so both TensorCores get row tiles.
    On v5e prefer precision=lax.Precision.DEFAULT (or bf16 operands) for the GEMM.
    """
    del ref_feature                    # provably unused (softmax over one key == 1)
    w_fused_t, pb = prepared
    N, E = offset_feature.shape
    out_dtype = out_dtype or offset_feature.dtype
    if precision is None:
        precision = (lax.Precision.HIGHEST if w_fused_t.dtype == jnp.float32
                     else lax.Precision.DEFAULT)

    # Row tile: multiple of 8 sublanes, never larger than needed; ragged tail is masked.
    tn = max(8, (min(int(tile_n), N) // 8) * 8)
    grid = (pl.cdiv(N, tn),)

    in_d = jnp.dtype(offset_feature.dtype).itemsize
    out_d = jnp.dtype(out_dtype).itemsize
    w_d = jnp.dtype(w_fused_t.dtype).itemsize
    cost = pl.CostEstimate(
        flops=2 * N * E * E + 10 * N * E,
        transcendentals=N,                                  # one rsqrt per row
        bytes_accessed=N * E * (in_d + out_d) + E * E * w_d + 8 * E * 4,
    )

    fixed = lambda i: (0, 0)
    kernel = functools.partial(_vit_rx_kernel, precision=precision)
    return pl.pallas_call(
        kernel,
        out_shape=jax.ShapeDtypeStruct((N, E), out_dtype),
        grid=grid,
        in_specs=[
            # Activations: streamed, double-buffered, pipelined with compute.
            pl.BlockSpec((tn, E), lambda i: (i, 0)),
            # Resident fused weight + packed params: constant index, single-buffered.
            pl.BlockSpec((E, E), fixed, pipeline_mode=pl.Buffered(1)),
            pl.BlockSpec((8, E), fixed, pipeline_mode=pl.Buffered(1)),
        ],
        out_specs=pl.BlockSpec((tn, E), lambda i: (i, 0)),
        compiler_params=pltpu.CompilerParams(
            dimension_semantics=("parallel",),              # megacore-shard row tiles
            vmem_limit_bytes=vmem_limit_bytes),
        cost_estimate=cost,
    )(offset_feature, w_fused_t, pb)


def reference_forward(offset_feature, ref_feature, params):
    """Pure-JAX reference mirroring the PyTorch forward (full q/k/softmax path)."""
    (wqkv, bq, bk, bv, wo, bo, gamma, beta, gate, H) = params
    N, E = offset_feature.shape
    Dh = E // H
    hp = lax.Precision.HIGHEST
    q = jnp.dot(ref_feature, wqkv[0:E].T, precision=hp) + bq
    k = jnp.dot(offset_feature, wqkv[E:2 * E].T, precision=hp) + bk
    v = jnp.dot(offset_feature, wqkv[2 * E:3 * E].T, precision=hp) + bv
    qh = q.reshape(N, H, Dh)
    kh = k.reshape(N, H, Dh)
    vh = v.reshape(N, H, Dh)
    scores = (qh * kh).sum(-1, keepdims=True) / math.sqrt(Dh)     # (N, H, 1)
    p = jax.nn.softmax(scores, axis=-1)                           # exactly 1 (S=1)
    attn = (p * vh).reshape(N, E)
    attn_out = jnp.dot(attn, wo.T, precision=hp) + bo
    g = gate[0, 0]
    res = g * attn_out + (1.0 - g) * offset_feature
    mean = res.mean(-1, keepdims=True)
    var = ((res - mean) ** 2).mean(-1, keepdims=True)
    return (res - mean) / jnp.sqrt(var + 1e-5) * gamma + beta


if __name__ == "__main__":
    # Small instantiation: d_model=128, num_heads=8 (head_dim=16), 200 tokens.
    # N=200 with tile_n=128 exercises the ragged, masked last row-tile (no pad/slice).
    N, E, H = 200, 128, 8

    key = jax.random.PRNGKey(0)
    (k_off, k_ref, k_inw, k_bq, k_bk, k_bv,
     k_ow, k_bo, k_g, k_b) = jax.random.split(key, 10)

    offset_feature = jax.random.normal(k_off, (N, E), jnp.float32)
    ref_feature = jax.random.normal(k_ref, (N, E), jnp.float32)

    bound = 1.0 / math.sqrt(E)
    in_proj_weight = jax.random.uniform(k_inw, (3 * E, E), jnp.float32, -bound, bound)
    # Nonzero q/k biases: they provably do not change the output (softmax of 1 key == 1).
    b_q = jax.random.uniform(k_bq, (1, E), jnp.float32, -bound, bound)
    b_k = jax.random.uniform(k_bk, (1, E), jnp.float32, -bound, bound)
    b_v = jax.random.uniform(k_bv, (1, E), jnp.float32, -bound, bound)
    out_proj_weight = jax.random.uniform(k_ow, (E, E), jnp.float32, -bound, bound)
    out_proj_bias = jax.random.uniform(k_bo, (1, E), jnp.float32, -bound, bound)
    ln_gamma = 1.0 + 0.1 * jax.random.normal(k_g, (1, E), jnp.float32)
    ln_beta = 0.1 * jax.random.normal(k_b, (1, E), jnp.float32)
    gate = jnp.full((1, 1), 0.5, jnp.float32)   # nn.Parameter([0.5])

    params = (in_proj_weight, b_q, b_k, b_v, out_proj_weight, out_proj_bias,
              ln_gamma, ln_beta, gate, H)

    ref_out = jax.block_until_ready(
        reference_forward(offset_feature, ref_feature, params))

    # f32 path (weights folded once, outside the per-call path).
    prepared_f32 = prepare_vit_rx_params(params, matmul_dtype=jnp.float32)
    out = vit_transformer_rx(offset_feature, ref_feature, prepared_f32, tile_n=128)
    out = jax.block_until_ready(out)
    assert out.shape == (N, E) and out.dtype == jnp.float32
    err = float(jnp.max(jnp.abs(out - ref_out)))
    assert err < 1e-3, f"f32 path max err {err}"

    # bf16 streaming + bf16 MXU operands (v6e/v7x fast path); gate/LN math stays f32.
    prepared_bf16 = prepare_vit_rx_params(params, matmul_dtype=jnp.bfloat16)
    x_bf16 = offset_feature.astype(jnp.bfloat16)     # cast once at the producer
    out_bf16 = vit_transformer_rx(x_bf16, ref_feature, prepared_bf16,
                                  tile_n=512, out_dtype=jnp.float32)
    out_bf16 = jax.block_until_ready(out_bf16)
    err_bf16 = float(jnp.max(jnp.abs(out_bf16 - ref_out)))
    assert err_bf16 < 1e-1, f"bf16 path max err {err_bf16}"

    print("KERNEL_OK")
</pallas_src>

<mosaic_0001>
module attributes {stable_mosaic.version = 11 : i64} {
  func.func @_vit_rx_kernel(%arg0: i32, %arg1: memref<128x128xf32, #tpu.memory_space<vmem>>, %arg2: memref<128x128xf32, #tpu.memory_space<vmem>>, %arg3: memref<8x128xf32, #tpu.memory_space<vmem>>, %arg4: memref<128x128xf32, #tpu.memory_space<vmem>>) attributes {dimension_semantics = [#tpu.dimension_semantics<parallel>], iteration_bounds = array<i64: 2>, scalar_prefetch = 0 : i64, scratch_operands = 0 : i64, tpu.core_type = #tpu.core_type<tc>, window_params = [{transform_indices = @transform_0, window_bounds = array<i64: 128, 128>}, {pipeline_mode = #tpu.pipeline_mode<synchronous>, transform_indices = @transform_1, window_bounds = array<i64: 128, 128>}, {pipeline_mode = #tpu.pipeline_mode<synchronous>, transform_indices = @transform_2, window_bounds = array<i64: 8, 128>}, {transform_indices = @transform_3, window_bounds = array<i64: 128, 128>}]} {
    %c0 = arith.constant 0 : index
    %c0_0 = arith.constant 0 : index
    %0 = vector.load %arg1[%c0, %c0_0] : memref<128x128xf32, #tpu.memory_space<vmem>>, vector<128x128xf32>
    %c0_1 = arith.constant 0 : index
    %c0_2 = arith.constant 0 : index
    %1 = vector.load %arg2[%c0_1, %c0_2] : memref<128x128xf32, #tpu.memory_space<vmem>>, vector<128x128xf32>
    %c0_3 = arith.constant 0 : index
    %c0_4 = arith.constant 0 : index
    %2 = vector.load %arg3[%c0_3, %c0_4] : memref<8x128xf32, #tpu.memory_space<vmem>>, vector<8x128xf32>
    %cst = arith.constant dense<0.000000e+00> : vector<128x128xf32>
    %3 = tpu.matmul %0, %1, %cst {dimension_numbers = #tpu.dot_dimension_numbers<[1], [0], [0], [1], [0, 0, 1, 1], [], []>, precision = #tpu.contract_precision<fp32>} : vector<128x128xf32>, vector<128x128xf32>, vector<128x128xf32> -> vector<128x128xf32>
    %4 = vector.extract_strided_slice %2 {offsets = [0, 0], sizes = [1, 128], strides = [1, 1]} : vector<8x128xf32> to vector<1x128xf32>
    %5 = vector.extract_strided_slice %2 {offsets = [1, 0], sizes = [1, 128], strides = [1, 1]} : vector<8x128xf32> to vector<1x128xf32>
    %6 = vector.extract_strided_slice %2 {offsets = [2, 0], sizes = [1, 128], strides = [1, 1]} : vector<8x128xf32> to vector<1x128xf32>
    %7 = vector.extract_strided_slice %2 {offsets = [3, 0], sizes = [1, 128], strides = [1, 1]} : vector<8x128xf32> to vector<1x128xf32>
    %8 = vector.broadcast %4 : vector<1x128xf32> to vector<128x128xf32>
    %9 = arith.addf %3, %8 : vector<128x128xf32>
    %10 = vector.broadcast %5 : vector<1x128xf32> to vector<128x128xf32>
    %11 = arith.mulf %10, %0 : vector<128x128xf32>
    %12 = arith.addf %9, %11 : vector<128x128xf32>
    %cst_5 = arith.constant dense<0.000000e+00> : vector<128xf32>
    %13 = vector.multi_reduction <add>, %12, %cst_5 [1] : vector<128x128xf32> to vector<128xf32>
    %14 = vector.shape_cast %13 : vector<128xf32> to vector<128x1xf32>
    %15 = arith.mulf %12, %12 : vector<128x128xf32>
    %cst_6 = arith.constant dense<0.000000e+00> : vector<128xf32>
    %16 = vector.multi_reduction <add>, %15, %cst_6 [1] : vector<128x128xf32> to vector<128xf32>
    %17 = vector.shape_cast %16 : vector<128xf32> to vector<128x1xf32>
    %cst_7 = arith.constant 7.812500e-03 : f32
    %18 = vector.broadcast %cst_7 : f32 to vector<128x1xf32>
    %19 = arith.mulf %14, %18 : vector<128x1xf32>
    %cst_8 = arith.constant 7.812500e-03 : f32
    %20 = vector.broadcast %cst_8 : f32 to vector<128x1xf32>
    %21 = arith.mulf %17, %20 : vector<128x1xf32>
    %22 = arith.mulf %19, %19 : vector<128x1xf32>
    %23 = arith.subf %21, %22 : vector<128x1xf32>
    %cst_9 = arith.constant 9.99999974E-6 : f32
    %24 = vector.broadcast %cst_9 : f32 to vector<128x1xf32>
    %25 = arith.addf %23, %24 : vector<128x1xf32>
    %26 = math.rsqrt %25 : vector<128x1xf32>
    %27 = vector.broadcast %19 : vector<128x1xf32> to vector<128x128xf32>
    %28 = arith.subf %12, %27 : vector<128x128xf32>
    %29 = vector.broadcast %26 : vector<128x1xf32> to vector<128x128xf32>
    %30 = vector.broadcast %6 : vector<1x128xf32> to vector<128x128xf32>
    %31 = arith.mulf %29, %30 : vector<128x128xf32>
    %32 = arith.mulf %28, %31 : vector<128x128xf32>
    %33 = vector.broadcast %7 : vector<1x128xf32> to vector<128x128xf32>
    %34 = arith.addf %32, %33 : vector<128x128xf32>
    %c0_10 = arith.constant 0 : index
    %c0_11 = arith.constant 0 : index
    %35 = vector.load %arg4[%c0_10, %c0_11] : memref<128x128xf32, #tpu.memory_space<vmem>>, vector<128x128xf32>
    tpu.vector_store %arg4[%c0_10, %c0_11], %34 {strides = array<i32>} : memref<128x128xf32, #tpu.memory_space<vmem>>, vector<128x128xf32>,
    return
  }
  func.func @transform_0(%arg0: i32) -> (i32, i32) {
    %c0_i32 = arith.constant 0 : i32
    %c0_i32_0 = arith.constant 0 : i32
    return %arg0, %c0_i32 : i32, i32
  }
  func.func @transform_1(%arg0: i32) -> (i32, i32) {
    %c0_i32 = arith.constant 0 : i32
    %c0_i32_0 = arith.constant 0 : i32
    %c0_i32_1 = arith.constant 0 : i32
    return %c0_i32, %c0_i32_0 : i32, i32
  }
  func.func @transform_2(%arg0: i32) -> (i32, i32) {
    %c0_i32 = arith.constant 0 : i32
    %c0_i32_0 = arith.constant 0 : i32
    %c0_i32_1 = arith.constant 0 : i32
    return %c0_i32, %c0_i32_0 : i32, i32
  }
  func.func @transform_3(%arg0: i32) -> (i32, i32) {
    %c0_i32 = arith.constant 0 : i32
    %c0_i32_0 = arith.constant 0 : i32
    return %arg0, %c0_i32 : i32, i32
  }
}

</mosaic_0001>

<llo_original>
// kernel: tpu_custom_call.1
$region0: #{tpu_custom_call.1}
  #allocation0 [shape = 'u32[]', space=smem, size = 0x4, offset = 0x4, fixed_abs, tag = 'smem constant byte address 0x4 - core index']
  #allocation1 [shape = 'u32[144,128]{1,0:T(1,128)}', space=vmem, size = 0x12000, scoped, tag = 'internal scratch']
  %s0 = inlined_call_operand.hbm [shape: f32[200,128], index: 0, kind: input, shape index: {}]
  %s1 = inlined_call_operand.hbm [shape: f32[128,128], index: 1, kind: input, shape index: {}]
  %s2 = inlined_call_operand.hbm [shape: f32[8,128], index: 2, kind: input, shape index: {}]
  %s3 = inlined_call_operand.hbm [shape: f32[200,128], index: 3, kind: output, shape index: {}]
  %s4 = sld [smem:[#allocation0]]
  $region57: #{tpu_custom_call.1} parent=0
    _
  %s6 = ssub.s32 1, %s4
  %s7 = scalar_select 0, %s6, %s4
  $region1: #{tpu_custom_call.1} parent=0
    #allocation2 [shape = 'u8[131072]{0}', space=vmem, size = 0x20000, scoped, tag = 'input window, operand 0']
    #allocation3 [shape = 's32[2]{0}', space=sflag, size = 0x8, scoped, tag = 'scoped memory for tpu_custom_call.1']
    #allocation4 [shape = 's32[2]{0}', space=sflag, size = 0x8, scoped, tag = 'scoped memory for tpu_custom_call.1']
    #allocation5 [shape = 'u8[65536]{0}', space=vmem, size = 0x10000, scoped, tag = 'input window, operand 1, single buffered']
    #allocation6 [shape = 's32[1]{0}', space=sflag, size = 0x4, scoped, tag = 'scoped memory for tpu_custom_call.1']
    #allocation7 [shape = 'u8[4096]{0}', space=vmem, size = 0x1000, scoped, tag = 'input window, operand 2, single buffered']
    #allocation8 [shape = 'u8[131072]{0}', space=vmem, size = 0x20000, scoped, tag = 'output window, operand 0']
    %8 = vsyncpa [#allocation3], 0
    %s9 = scalar_lea.sflag [#allocation3], 1
    %10 = vsyncpa %s9, 0
    %11 = vsyncpa [#allocation6], 0
    %12 = vsyncpa [#allocation4], 0
    %s13 = scalar_lea.sflag [#allocation4], 1
    %14 = vsyncpa %s13, 0
    loop: start=0, step=1, limit=4
    $region2: #{tpu_custom_call.1} parent=1 // loop_pre_header
      _
    $region3: #{tpu_custom_call.1} parent=1 // loop_header
      %s16 = sphi 0, %s20
      %p17 = scmp.ge.s32.totalorder %s16, 4
      %s26 = sphi 0, %s28
      %s29 = sphi 0, %s26
      %s30 = sphi 0, %s29
      %s46 = sphi 0, %s30
      %s50 = sphi 0, %s50
      %s52 = sphi 0, %s50
      %s53 = sphi 0, %s52
      %s67 = sphi 0, %s53
      %s71 = sphi 0, %s71
      %s73 = sphi 0, %s71
      %s74 = sphi 0, %s73
      %s88 = sphi 0, %s74
      %s94 = sphi 0, %s96
      %s97 = sphi 0, %s94
      %s98 = sphi 0, %s97
      %s114 = sphi 0, %s98
    $region4: #{tpu_custom_call.1} parent=1 // loop_header_branch
      %19 = sbr.rel (%p17) target = $region8
    $region5: #{tpu_custom_call.1} parent=1 // loop_body
      %s21 = ssub.s32 %s16, 1
      %s22 = ssub.s32 %s16, 2
      %s23 = sadd.s32 %s16, 1
      %s24 = ssub.s32 %s16, %s23
      %p25 = scmp.eq.s32.totalorder %s24, 0
      %s27 = sadd.s32 %s26, 1
      %s28 = scalar_select %p25, %s26, %s27
      %p31 = pneg %p25
      %p32 = scmp.eq.s32.totalorder %s16, 1
      %p33 = por %p31, %p32
      %p34 = scmp.ne.s32.totalorder %s26, %s29
      %p35 = scmp.eq.s32.totalorder %s16, 0
      %p36 = por %p34, %p35
      %p37 = scmp.ne.s32.totalorder %s26, %s29
      %p38 = scmp.eq.s32.totalorder %s21, 1
      %p39 = por %p37, %p38
      %p40 = scmp.ne.s32.totalorder %s29, %s30
      %p41 = scmp.eq.s32.totalorder %s21, 0
      %p42 = por %p40, %p41
      %p43 = scmp.ne.s32.totalorder %s29, %s30
      %p44 = scmp.eq.s32.totalorder %s22, 1
      %p45 = por %p43, %p44
      %p47 = scmp.ne.s32.totalorder %s30, %s46
      %p48 = scmp.eq.s32.totalorder %s22, 0
      %p49 = por %p47, %p48
      %s51 = sadd.s32 %s50, 1
      %p54 = scmp.eq.s32.totalorder %s16, 1
      %p55 = scmp.ne.s32.totalorder %s50, %s52
      %p56 = scmp.eq.s32.totalorder %s16, 0
      %p57 = por %p55, %p56
      %p58 = scmp.ne.s32.totalorder %s50, %s52
      %p59 = scmp.eq.s32.totalorder %s21, 1
      %p60 = por %p58, %p59
      %p61 = scmp.ne.s32.totalorder %s52, %s53
      %p62 = scmp.eq.s32.totalorder %s21, 0
      %p63 = por %p61, %p62
      %p64 = scmp.ne.s32.totalorder %s52, %s53
      %p65 = scmp.eq.s32.totalorder %s22, 1
      %p66 = por %p64, %p65
      %p68 = scmp.ne.s32.totalorder %s53, %s67
      %p69 = scmp.eq.s32.totalorder %s22, 0
      %p70 = por %p68, %p69
      %s72 = sadd.s32 %s71, 1
      %p75 = scmp.eq.s32.totalorder %s16, 1
      %p76 = scmp.ne.s32.totalorder %s71, %s73
      %p77 = scmp.eq.s32.totalorder %s16, 0
      %p78 = por %p76, %p77
      %p79 = scmp.ne.s32.totalorder %s71, %s73
      %p80 = scmp.eq.s32.totalorder %s21, 1
      %p81 = por %p79, %p80
      %p82 = scmp.ne.s32.totalorder %s73, %s74
      %p83 = scmp.eq.s32.totalorder %s21, 0
      %p84 = por %p82, %p83
      %p85 = scmp.ne.s32.totalorder %s73, %s74
      %p86 = scmp.eq.s32.totalorder %s22, 1
      %p87 = por %p85, %p86
      %p89 = scmp.ne.s32.totalorder %s74, %s88
      %p90 = scmp.eq.s32.totalorder %s22, 0
      %p91 = por %p89, %p90
      %s92 = ssub.s32 %s16, %s23
      %p93 = scmp.eq.s32.totalorder %s92, 0
      %s95 = sadd.s32 %s94, 1
      %s96 = scalar_select %p93, %s94, %s95
      %p99 = pneg %p93
      %p100 = scmp.eq.s32.totalorder %s16, 1
      %p101 = por %p99, %p100
      %p102 = scmp.ne.s32.totalorder %s94, %s97
      %p103 = scmp.eq.s32.totalorder %s16, 0
      %p104 = por %p102, %p103
      %p105 = scmp.ne.s32.totalorder %s94, %s97
      %p106 = scmp.eq.s32.totalorder %s21, 1
      %p107 = por %p105, %p106
      %p108 = scmp.ne.s32.totalorder %s97, %s98
      %p109 = scmp.eq.s32.totalorder %s21, 0
      %p110 = por %p108, %p109
      %p111 = scmp.ne.s32.totalorder %s97, %s98
      %p112 = scmp.eq.s32.totalorder %s22, 1
      %p113 = por %p111, %p112
      %p115 = scmp.ne.s32.totalorder %s98, %s114
      %p116 = scmp.eq.s32.totalorder %s22, 0
      %p117 = por %p115, %p116
      %p118 = scmp.le.s32.totalorder 1, %s16
      %p119 = scmp.lt.s32.totalorder %s16, 3
      %p120 = pnand %p118, %p119
      %p121 = pneg %p120
      // Predicated region
      $region9: #{tpu_custom_call.1} parent=5 // pred_check
        _
      $region10: #{tpu_custom_call.1} parent=5 // pred_check_branch
        %123 = sbr.rel (%p120) target = $region12
      $region11: #{tpu_custom_call.1} parent=5 // pred_region
        %s124 = ssub.s32 %s16, 1
        // Predicated region
        $region13: #{tpu_custom_call.1} parent=11 // pred_check
          %p125 = pneg %p63
        $region14: #{tpu_custom_call.1} parent=11 // pred_check_branch
          %127 = sbr.rel (%p125) target = $region16
        $region15: #{tpu_custom_call.1} parent=11 // pred_region
          %s129 = ssub.s32 2048, 2048
          %130 = vsyncadd [#allocation6], %s129
          %s131 = sshll.u32 [#allocation5], 4
          %s132 = int_to_ptr.vmem [resolvable:$true] %s131
          %137 = dma.hbm_to_vmem [thread:$0]  %s1, 2048, %s132, [#allocation6], 128, 128, 8
        $region16: #{tpu_custom_call.1} parent=11 // pred_fallthru
          _
        // Predicated region
        $region17: #{tpu_custom_call.1} parent=11 // pred_check
          %p138 = pneg %p84
        $region18: #{tpu_custom_call.1} parent=11 // pred_check_branch
          %140 = sbr.rel (%p138) target = $region20
        $region19: #{tpu_custom_call.1} parent=11 // pred_region
          %s142 = ssub.s32 128, 128
          %143 = vsyncadd [#allocation6], %s142
          %s145 = sshll.u32 [#allocation7], 4
          %s146 = int_to_ptr.vmem [resolvable:$true] %s145
          %148 = dma.hbm_to_vmem [thread:$0]  %s2, 128, %s146, [#allocation6]
        $region20: #{tpu_custom_call.1} parent=11 // pred_fallthru
          _
      $region12: #{tpu_custom_call.1} parent=5 // pred_fallthru
        _
      %p149 = scmp.lt.s32.totalorder %s16, 2
      // Predicated region
      $region21: #{tpu_custom_call.1} parent=5 // pred_check
        %p150 = pneg %p149
      $region22: #{tpu_custom_call.1} parent=5 // pred_check_branch
        %152 = sbr.rel (%p150) target = $region24
      $region23: #{tpu_custom_call.1} parent=5 // pred_region
        // Predicated region
        $region25: #{tpu_custom_call.1} parent=23 // pred_check
          %p153 = pneg %p36
        $region26: #{tpu_custom_call.1} parent=23 // pred_check_branch
          %155 = sbr.rel (%p153) target = $region28
        $region27: #{tpu_custom_call.1} parent=23 // pred_region
          %s156 = sand.u32 %s26, 1
          %s157 = scalar_lea.sflag [#allocation3], %s156
          %s158 = sand.u32 %s26, 1
          %s159 = smul.addr %s158, 128
          %s160 = scalar_lea.vmem [#allocation2], %s159
          %s161 = smul.u32 16, %s16
          %s162 = ssub.s32 25, %s161
          %p163 = scmp.lt.s32.totalorder %s162, 16
          %s164 = scalar_select %p163, %s162, 16
          %s165 = smul.u32 128, %s164
          %s167 = ssub.s32 2048, %s165
          %168 = vsyncadd %s157, %s167
          %p169 = scmp.ne.s32.totalorder 0, %s165
          %s170 = smul.addr %s161, 128
          %s171 = scalar_lea.hbm %s0, %s170
          %s172 = smul.u32 8, %s164
          %s173 = sshll.u32 %s160, 4
          %s174 = int_to_ptr.vmem [resolvable:$true] %s173
          %s175 = sshll.u32 %s172, 4
          %179 = dma.hbm_to_vmem [thread:$0]  (%p169), %s171, %s175, %s174, %s157, 128, 128, 8
        $region28: #{tpu_custom_call.1} parent=23 // pred_fallthru
          _
      $region24: #{tpu_custom_call.1} parent=5 // pred_fallthru
        _
      %p180 = scmp.le.s32.totalorder 1, %s16
      %p181 = scmp.lt.s32.totalorder %s16, 3
      %p182 = pnand %p180, %p181
      %p183 = pneg %p182
      // Predicated region
      $region29: #{tpu_custom_call.1} parent=5 // pred_check
        _
      $region30: #{tpu_custom_call.1} parent=5 // pred_check_branch
        %185 = sbr.rel (%p182) target = $region32
      $region31: #{tpu_custom_call.1} parent=5 // pred_region
        %s186 = ssub.s32 %s16, 1
        %s187 = sand.u32 %s29, 1
        %s188 = scalar_lea.sflag [#allocation3], %s187
        %s189 = sand.u32 %s29, 1
        %s190 = smul.addr %s189, 128
        %s191 = scalar_lea.vmem [#allocation2], %s190
        // Predicated region
        $region33: #{tpu_custom_call.1} parent=31 // pred_check
          %p192 = pneg %p42
        $region34: #{tpu_custom_call.1} parent=31 // pred_check_branch
          %194 = sbr.rel (%p192) target = $region36
        $region35: #{tpu_custom_call.1} parent=31 // pred_region
          %195 = dma.done %s188, 2048
        $region36: #{tpu_custom_call.1} parent=31 // pred_fallthru
          _
        // Predicated region
        $region37: #{tpu_custom_call.1} parent=31 // pred_check
          %p196 = pneg %p63
        $region38: #{tpu_custom_call.1} parent=31 // pred_check_branch
          %198 = sbr.rel (%p196) target = $region40
        $region39: #{tpu_custom_call.1} parent=31 // pred_region
          %199 = dma.done [#allocation6], 2048
        $region40: #{tpu_custom_call.1} parent=31 // pred_fallthru
          _
        // Predicated region
        $region41: #{tpu_custom_call.1} parent=31 // pred_check
          %p200 = pneg %p84
        $region42: #{tpu_custom_call.1} parent=31 // pred_check_branch
          %202 = sbr.rel (%p200) target = $region44
        $region43: #{tpu_custom_call.1} parent=31 // pred_region
          %203 = dma.done [#allocation6], 128
        $region44: #{tpu_custom_call.1} parent=31 // pred_fallthru
          _
        %s204 = sand.u32 %s29, 1
        %s205 = scalar_lea.sflag [#allocation3], %s204
        %s206 = sand.u32 %s29, 1
        %s207 = smul.addr %s206, 128
        %s208 = scalar_lea.vmem [#allocation2], %s207
        %p209 = pneg %p42
        %p210 = pneg %p39
        %p211 = pneg %p63
        %p212 = pneg %p60
        %p213 = pneg %p84
        %p214 = pneg %p81
        %p215 = pneg %p110
        %p216 = pneg %p107
        %s217 = sand.u32 %s97, 1
        %s218 = scalar_lea.sflag [#allocation4], %s217
        %s219 = sand.u32 %s97, 1
        %s220 = smul.addr %s219, 128
        %s221 = scalar_lea.vmem [#allocation8], %s220
        %s222 = smul.u32 16, %s21
        %s223 = ssub.s32 25, %s222
        %p224 = scmp.lt.s32.totalorder %s223, 16
        %s225 = scalar_select %p224, %s223, 16
        %s226 = smul.u32 128, %s225
        %s227 = smul.u32 16, %s21
        %s228 = ssub.s32 25, %s227
        %p229 = scmp.lt.s32.totalorder %s228, 16
        %s230 = scalar_select %p229, %s228, 16
        %s231 = smul.u32 128, %s230
        %v232 = vld [vmem:[%s191] sm:$0xff]
        %v233 = vld [vmem:[%s191 + $0x8] sm:$0xff]
        %v234 = vld [vmem:[%s191 + $0x10] sm:$0xff]
        %v235 = vld [vmem:[%s191 + $0x18] sm:$0xff]
        %v236 = vld [vmem:[%s191 + $0x20] sm:$0xff]
        %v237 = vld [vmem:[%s191 + $0x28] sm:$0xff]
        %v238 = vld [vmem:[%s191 + $0x30] sm:$0xff]
        %v239 = vld [vmem:[%s191 + $0x38] sm:$0xff]
        %v240 = vld [vmem:[%s191 + $0x40] sm:$0xff]
        %v241 = vld [vmem:[%s191 + $0x48] sm:$0xff]
        %v242 = vld [vmem:[%s191 + $0x50] sm:$0xff]
        %v243 = vld [vmem:[%s191 + $0x58] sm:$0xff]
        %v244 = vld [vmem:[%s191 + $0x60] sm:$0xff]
        %v245 = vld [vmem:[%s191 + $0x68] sm:$0xff]
        %v246 = vld [vmem:[%s191 + $0x70] sm:$0xff]
        %v247 = vld [vmem:[%s191 + $0x78] sm:$0xff]
        %v248 = vld [vmem:[#allocation5] sm:$0xff]
        %v249 = vld [vmem:[#allocation5 + $0x8] sm:$0xff]
        %v250 = vld [vmem:[#allocation5 + $0x10] sm:$0xff]
        %v251 = vld [vmem:[#allocation5 + $0x18] sm:$0xff]
        %v252 = vld [vmem:[#allocation5 + $0x20] sm:$0xff]
        %v253 = vld [vmem:[#allocation5 + $0x28] sm:$0xff]
        %v254 = vld [vmem:[#allocation5 + $0x30] sm:$0xff]
        %v255 = vld [vmem:[#allocation5 + $0x38] sm:$0xff]
        %v256 = vld [vmem:[#allocation5 + $0x40] sm:$0xff]
        %v257 = vld [vmem:[#allocation5 + $0x48] sm:$0xff]
        %v258 = vld [vmem:[#allocation5 + $0x50] sm:$0xff]
        %v259 = vld [vmem:[#allocation5 + $0x58] sm:$0xff]
        %v260 = vld [vmem:[#allocation5 + $0x60] sm:$0xff]
        %v261 = vld [vmem:[#allocation5 + $0x68] sm:$0xff]
        %v262 = vld [vmem:[#allocation5 + $0x70] sm:$0xff]
        %v263 = vld [vmem:[#allocation5 + $0x78] sm:$0xff]
        %v264 = vld [vmem:[#allocation7] sm:$0xff]
        %v265 = vlaneseq
        %v266 = vshrl.u32 %v265, 7
        %v267 = vsub.s32 0, %v266
        %v268 = vrot.slane %v264, %v267
        %269 = vmatprep.subr.mxu0 0.0
        %v270 = vand.u32 %v248, 4294901760
        %271 = vmatpush1.msra.mxu0 %v270
        %272 = vmatprep.subr.mxu0 0.0
        %v273 = vand.u32 %v249, 4294901760
        %274 = vmatpush1.msra.mxu0 %v273
        %275 = vmatprep.subr.mxu0 0.0
        %v276 = vand.u32 %v250, 4294901760
        %277 = vmatpush1.msra.mxu0 %v276
        %278 = vmatprep.subr.mxu0 0.0
        %v279 = vand.u32 %v251, 4294901760
        %280 = vmatpush1.msra.mxu0 %v279
        %281 = vmatprep.subr.mxu0 0.0
        %v282 = vand.u32 %v252, 4294901760
        %283 = vmatpush1.msra.mxu0 %v282
        %284 = vmatprep.subr.mxu0 0.0
        %v285 = vand.u32 %v253, 4294901760
        %286 = vmatpush1.msra.mxu0 %v285
        %287 = vmatprep.subr.mxu0 0.0
        %v288 = vand.u32 %v254, 4294901760
        %289 = vmatpush1.msra.mxu0 %v288
        %290 = vmatprep.subr.mxu0 0.0
        %v291 = vand.u32 %v255, 4294901760
        %292 = vmatpush1.msra.mxu0 %v291
        %293 = vmatprep.subr.mxu0 0.0
        %v294 = vand.u32 %v256, 4294901760
        %295 = vmatpush1.msra.mxu0 %v294
        %296 = vmatprep.subr.mxu0 0.0
        %v297 = vand.u32 %v257, 4294901760
        %298 = vmatpush1.msra.mxu0 %v297
        %299 = vmatprep.subr.mxu0 0.0
        %v300 = vand.u32 %v258, 4294901760
        %301 = vmatpush1.msra.mxu0 %v300
        %302 = vmatprep.subr.mxu0 0.0
        %v303 = vand.u32 %v259, 4294901760
        %304 = vmatpush1.msra.mxu0 %v303
        %305 = vmatprep.subr.mxu0 0.0
        %v306 = vand.u32 %v260, 4294901760
        %307 = vmatpush1.msra.mxu0 %v306
        %308 = vmatprep.subr.mxu0 0.0
        %v309 = vand.u32 %v261, 4294901760
        %310 = vmatpush1.msra.mxu0 %v309
        %311 = vmatprep.subr.mxu0 0.0
        %v312 = vand.u32 %v262, 4294901760
        %313 = vmatpush1.msra.mxu0 %v312
        %314 = vmatprep.subr.mxu0 0.0
        %v315 = vand.u32 %v263, 4294901760
        %316 = vmatpush1.msra.mxu0 %v315
        %317 = vmatprep.subr.mxu0 0.0
        %318 = vmatpush1.msra.mxu0 0.0
        %319 = vmatprep.subr.mxu0 0.0
        %320 = vmatpush1.msra.mxu0 0.0
        %321 = vmatprep.subr.mxu0 0.0
        %322 = vmatpush1.msra.mxu0 0.0
        %323 = vmatprep.subr.mxu0 0.0
        %324 = vmatpush1.msra.mxu0 0.0
        %325 = vmatprep.subr.mxu0 0.0
        %326 = vmatpush1.msra.mxu0 0.0
        %327 = vmatprep.subr.mxu0 0.0
        %328 = vmatpush1.msra.mxu0 0.0
        %329 = vmatprep.subr.mxu0 0.0
        %330 = vmatpush1.msra.mxu0 0.0
        %331 = vmatprep.subr.mxu0 0.0
        %332 = vmatpush1.msra.mxu0 0.0
        %333 = vmatprep.subr.mxu0 0.0
        %334 = vmatpush1.msra.mxu0 0.0
        %335 = vmatprep.subr.mxu0 0.0
        %336 = vmatpush1.msra.mxu0 0.0
        %337 = vmatprep.subr.mxu0 0.0
        %338 = vmatpush1.msra.mxu0 0.0
        %339 = vmatprep.subr.mxu0 0.0
        %340 = vmatpush1.msra.mxu0 0.0
        %341 = vmatprep.subr.mxu0 0.0
        %342 = vmatpush1.msra.mxu0 0.0
        %343 = vmatprep.subr.mxu0 0.0
        %344 = vmatpush1.msra.mxu0 0.0
        %345 = vmatprep.subr.mxu0 0.0
        %346 = vmatpush1.msra.mxu0 0.0
        %347 = vmatprep.subr.mxu0 0.0
        %348 = vmatpush1.msra.mxu0 0.0
        %349 = vmatprep.mubr.f32.mxu0 0.0
        %v350 = vand.u32 %v232, 4294901760
        %v351 = vsub.f32 %v232, %v350
        %v352 = vand.u32 %v351, 4294901760
        %v353 = vsub.f32 %v351, %v352
        %v354 = vand.u32 %v353, 4294901760
        %355 = vmatmul.mubr.f32.gmra.mrb[0].mxu0 %v354
        %v356 = vpop.f32.mrb[0].mxu0
        %v357 = vadd.f32 %v268, %v356
        %v358 = vpop.f32.mrb[0].mxu0
        %359 = vmatprep.mubr.f32.mxu0 0.0
        %v360 = vand.u32 %v233, 4294901760
        %v361 = vsub.f32 %v233, %v360
        %v362 = vand.u32 %v361, 4294901760
        %v363 = vsub.f32 %v361, %v362
        %v364 = vand.u32 %v363, 4294901760
        %365 = vmatmul.mubr.f32.gmra.mrb[0].mxu0 %v364
        %v366 = vpop.f32.mrb[0].mxu0
        %v367 = vadd.f32 %v268, %v366
        %v368 = vpop.f32.mrb[0].mxu0
        %369 = vmatprep.mubr.f32.mxu0 0.0
        %v370 = vand.u32 %v234, 4294901760
        %v371 = vsub.f32 %v234, %v370
        %v372 = vand.u32 %v371, 4294901760
        %v373 = vsub.f32 %v371, %v372
        %v374 = vand.u32 %v373, 4294901760
        %375 = vmatmul.mubr.f32.gmra.mrb[0].mxu0 %v374
        %v376 = vpop.f32.mrb[0].mxu0
        %v377 = vadd.f32 %v268, %v376
        %v378 = vpop.f32.mrb[0].mxu0
        %379 = vmatprep.mubr.f32.mxu0 0.0
        %v380 = vand.u32 %v235, 4294901760
        %v381 = vsub.f32 %v235, %v380
        %v382 = vand.u32 %v381, 4294901760
        %v383 = vsub.f32 %v381, %v382
        %v384 = vand.u32 %v383, 4294901760
        %385 = vmatmul.mubr.f32.gmra.mrb[0].mxu0 %v384
        %v386 = vpop.f32.mrb[0].mxu0
        %v387 = vadd.f32 %v268, %v386
        %v388 = vpop.f32.mrb[0].mxu0
        %389 = vmatprep.mubr.f32.mxu0 0.0
        %v390 = vand.u32 %v236, 4294901760
        %v391 = vsub.f32 %v236, %v390
        %v392 = vand.u32 %v391, 4294901760
        %v393 = vsub.f32 %v391, %v392
        %v394 = vand.u32 %v393, 4294901760
        %395 = vmatmul.mubr.f32.gmra.mrb[0].mxu0 %v394
        %v396 = vpop.f32.mrb[0].mxu0
        %v397 = vadd.f32 %v268, %v396
        %v398 = vpop.f32.mrb[0].mxu0
        %399 = vmatprep.mubr.f32.mxu0 0.0
        %v400 = vand.u32 %v237, 4294901760
        %v401 = vsub.f32 %v237, %v400
        %v402 = vand.u32 %v401, 4294901760
        %v403 = vsub.f32 %v401, %v402
        %v404 = vand.u32 %v403, 4294901760
        %405 = vmatmul.mubr.f32.gmra.mrb[0].mxu0 %v404
        %v406 = vpop.f32.mrb[0].mxu0
        %v407 = vadd.f32 %v268, %v406
        %v408 = vpop.f32.mrb[0].mxu0
        %409 = vmatprep.mubr.f32.mxu0 0.0
        %v410 = vand.u32 %v238, 4294901760
        %v411 = vsub.f32 %v238, %v410
        %v412 = vand.u32 %v411, 4294901760
        %v413 = vsub.f32 %v411, %v412
        %v414 = vand.u32 %v413, 4294901760
        %415 = vmatmul.mubr.f32.gmra.mrb[0].mxu0 %v414
        %v416 = vpop.f32.mrb[0].mxu0
        %v417 = vadd.f32 %v268, %v416
        %v418 = vpop.f32.mrb[0].mxu0
        %419 = vmatprep.mubr.f32.mxu0 0.0
        %v420 = vand.u32 %v239, 4294901760
        %v421 = vsub.f32 %v239, %v420
        %v422 = vand.u32 %v421, 4294901760
        %v423 = vsub.f32 %v421, %v422
        %v424 = vand.u32 %v423, 4294901760
        %425 = vmatmul.mubr.f32.gmra.mrb[0].mxu0 %v424
        %v426 = vpop.f32.mrb[0].mxu0
        %v427 = vadd.f32 %v268, %v426
        %v428 = vpop.f32.mrb[0].mxu0
        %429 = vmatprep.mubr.f32.mxu0 0.0
        %v430 = vand.u32 %v240, 4294901760
        %v431 = vsub.f32 %v240, %v430
        %v432 = vand.u32 %v431, 4294901760
        %v433 = vsub.f32 %v431, %v432
        %v434 = vand.u32 %v433, 4294901760
        %435 = vmatmul.mubr.f32.gmra.mrb[0].mxu0 %v434
        %v436 = vpop.f32.mrb[0].mxu0
        %v437 = vadd.f32 %v268, %v436
        %v438 = vpop.f32.mrb[0].mxu0
        %439 = vmatprep.mubr.f32.mxu0 0.0
        %v440 = vand.u32 %v241, 4294901760
        %v441 = vsub.f32 %v241, %v440
        %v442 = vand.u32 %v441, 4294901760
        %v443 = vsub.f32 %v441, %v442
        %v444 = vand.u32 %v443, 4294901760
        %445 = vmatmul.mubr.f32.gmra.mrb[0].mxu0 %v444
        %v446 = vpop.f32.mrb[0].mxu0
        %v447 = vadd.f32 %v268, %v446
        %v448 = vpop.f32.mrb[0].mxu0
        %449 = vmatprep.mubr.f32.mxu0 0.0
        %v450 = vand.u32 %v242, 4294901760
        %v451 = vsub.f32 %v242, %v450
        %v452 = vand.u32 %v451, 4294901760
        %v453 = vsub.f32 %v451, %v452
        %v454 = vand.u32 %v453, 4294901760
        %455 = vmatmul.mubr.f32.gmra.mrb[0].mxu0 %v454
        %v456 = vpop.f32.mrb[0].mxu0
        %v457 = vadd.f32 %v268, %v456
        %v458 = vpop.f32.mrb[0].mxu0
        %459 = vmatprep.mubr.f32.mxu0 0.0
        %v460 = vand.u32 %v243, 4294901760
        %v461 = vsub.f32 %v243, %v460
        %v462 = vand.u32 %v461, 4294901760
        %v463 = vsub.f32 %v461, %v462
        %v464 = vand.u32 %v463, 4294901760
        %465 = vmatmul.mubr.f32.gmra.mrb[0].mxu0 %v464
        %v466 = vpop.f32.mrb[0].mxu0
        %v467 = vadd.f32 %v268, %v466
        %v468 = vpop.f32.mrb[0].mxu0
        %469 = vmatprep.mubr.f32.mxu0 0.0
        %v470 = vand.u32 %v244, 4294901760
        %v471 = vsub.f32 %v244, %v470
        %v472 = vand.u32 %v471, 4294901760
        %v473 = vsub.f32 %v471, %v472
        %v474 = vand.u32 %v473, 4294901760
        %475 = vmatmul.mubr.f32.gmra.mrb[0].mxu0 %v474
        %v476 = vpop.f32.mrb[0].mxu0
        %v477 = vadd.f32 %v268, %v476
        %v478 = vpop.f32.mrb[0].mxu0
        %479 = vmatprep.mubr.f32.mxu0 0.0
        %v480 = vand.u32 %v245, 4294901760
        %v481 = vsub.f32 %v245, %v480
        %v482 = vand.u32 %v481, 4294901760
        %v483 = vsub.f32 %v481, %v482
        %v484 = vand.u32 %v483, 4294901760
        %485 = vmatmul.mubr.f32.gmra.mrb[0].mxu0 %v484
        %v486 = vpop.f32.mrb[0].mxu0
        %v487 = vadd.f32 %v268, %v486
        %v488 = vpop.f32.mrb[0].mxu0
        %489 = vmatprep.mubr.f32.mxu0 0.0
        %v490 = vand.u32 %v246, 4294901760
        %v491 = vsub.f32 %v246, %v490
        %v492 = vand.u32 %v491, 4294901760
        %v493 = vsub.f32 %v491, %v492
        %v494 = vand.u32 %v493, 4294901760
        %495 = vmatmul.mubr.f32.gmra.mrb[0].mxu0 %v494
        %v496 = vpop.f32.mrb[0].mxu0
        %v497 = vadd.f32 %v268, %v496
        %v498 = vpop.f32.mrb[0].mxu0
        %499 = vmatprep.mubr.f32.mxu0 0.0
        %v500 = vand.u32 %v247, 4294901760
        %v501 = vsub.f32 %v247, %v500
        %v502 = vand.u32 %v501, 4294901760
        %v503 = vsub.f32 %v501, %v502
        %v504 = vand.u32 %v503, 4294901760
        %505 = vmatmul.mubr.f32.gmra.mrb[0].mxu0 %v504
        %v506 = vpop.f32.mrb[0].mxu0
        %v507 = vadd.f32 %v268, %v506
        %v508 = vpop.f32.mrb[0].mxu0
        %509 = vdwg.mxu0
        %510 = vmatprep.subr.mxu0 0.0
        %v511 = vand.u32 %v248, 4294901760
        %v512 = vsub.f32 %v248, %v511
        %v513 = vand.u32 %v512, 4294901760
        %v514 = vsub.f32 %v512, %v513
        %v515 = vand.u32 %v514, 4294901760
        %516 = vmatpush1.msra.mxu0 %v515
        %517 = vmatprep.subr.mxu0 0.0
        %v518 = vand.u32 %v249, 4294901760
        %v519 = vsub.f32 %v249, %v518
        %v520 = vand.u32 %v519, 4294901760
        %v521 = vsub.f32 %v519, %v520
        %v522 = vand.u32 %v521, 4294901760
        %523 = vmatpush1.msra.mxu0 %v522
        %524 = vmatprep.subr.mxu0 0.0
        %v525 = vand.u32 %v250, 4294901760
        %v526 = vsub.f32 %v250, %v525
        %v527 = vand.u32 %v526, 4294901760
        %v528 = vsub.f32 %v526, %v527
        %v529 = vand.u32 %v528, 4294901760
        %530 = vmatpush1.msra.mxu0 %v529
        %531 = vmatprep.subr.mxu0 0.0
        %v532 = vand.u32 %v251, 4294901760
        %v533 = vsub.f32 %v251, %v532
        %v534 = vand.u32 %v533, 4294901760
        %v535 = vsub.f32 %v533, %v534
        %v536 = vand.u32 %v535, 4294901760
        %537 = vmatpush1.msra.mxu0 %v536
        %538 = vmatprep.subr.mxu0 0.0
        %v539 = vand.u32 %v252, 4294901760
        %v540 = vsub.f32 %v252, %v539
        %v541 = vand.u32 %v540, 4294901760
        %v542 = vsub.f32 %v540, %v541
        %v543 = vand.u32 %v542, 4294901760
        %544 = vmatpush1.msra.mxu0 %v543
        %545 = vmatprep.subr.mxu0 0.0
        %v546 = vand.u32 %v253, 4294901760
        %v547 = vsub.f32 %v253, %v546
        %v548 = vand.u32 %v547, 4294901760
        %v549 = vsub.f32 %v547, %v548
        %v550 = vand.u32 %v549, 4294901760
        %551 = vmatpush1.msra.mxu0 %v550
        %552 = vmatprep.subr.mxu0 0.0
        %v553 = vand.u32 %v254, 4294901760
        %v554 = vsub.f32 %v254, %v553
        %v555 = vand.u32 %v554, 4294901760
        %v556 = vsub.f32 %v554, %v555
        %v557 = vand.u32 %v556, 4294901760
        %558 = vmatpush1.msra.mxu0 %v557
        %559 = vmatprep.subr.mxu0 0.0
        %v560 = vand.u32 %v255, 4294901760
        %v561 = vsub.f32 %v255, %v560
        %v562 = vand.u32 %v561, 4294901760
        %v563 = vsub.f32 %v561, %v562
        %v564 = vand.u32 %v563, 4294901760
        %565 = vmatpush1.msra.mxu0 %v564
        %566 = vmatprep.subr.mxu0 0.0
        %v567 = vand.u32 %v256, 4294901760
        %v568 = vsub.f32 %v256, %v567
        %v569 = vand.u32 %v568, 4294901760
        %v570 = vsub.f32 %v568, %v569
        %v571 = vand.u32 %v570, 4294901760
        %572 = vmatpush1.msra.mxu0 %v571
        %573 = vmatprep.subr.mxu0 0.0
        %v574 = vand.u32 %v257, 4294901760
        %v575 = vsub.f32 %v257, %v574
        %v576 = vand.u32 %v575, 4294901760
        %v577 = vsub.f32 %v575, %v576
        %v578 = vand.u32 %v577, 4294901760
        %579 = vmatpush1.msra.mxu0 %v578
        %580 = vmatprep.subr.mxu0 0.0
        %v581 = vand.u32 %v258, 4294901760
        %v582 = vsub.f32 %v258, %v581
        %v583 = vand.u32 %v582, 4294901760
        %v584 = vsub.f32 %v582, %v583
        %v585 = vand.u32 %v584, 4294901760
        %586 = vmatpush1.msra.mxu0 %v585
        %587 = vmatprep.subr.mxu0 0.0
        %v588 = vand.u32 %v259, 4294901760
        %v589 = vsub.f32 %v259, %v588
        %v590 = vand.u32 %v589, 4294901760
        %v591 = vsub.f32 %v589, %v590
        %v592 = vand.u32 %v591, 4294901760
        %593 = vmatpush1.msra.mxu0 %v592
        %594 = vmatprep.subr.mxu0 0.0
        %v595 = vand.u32 %v260, 4294901760
        %v596 = vsub.f32 %v260, %v595
        %v597 = vand.u32 %v596, 4294901760
        %v598 = vsub.f32 %v596, %v597
        %v599 = vand.u32 %v598, 4294901760
        %600 = vmatpush1.msra.mxu0 %v599
        %601 = vmatprep.subr.mxu0 0.0
        %v602 = vand.u32 %v261, 4294901760
        %v603 = vsub.f32 %v261, %v602
        %v604 = vand.u32 %v603, 4294901760
        %v605 = vsub.f32 %v603, %v604
        %v606 = vand.u32 %v605, 4294901760
        %607 = vmatpush1.msra.mxu0 %v606
        %608 = vmatprep.subr.mxu0 0.0
        %v609 = vand.u32 %v262, 4294901760
        %v610 = vsub.f32 %v262, %v609
        %v611 = vand.u32 %v610, 4294901760
        %v612 = vsub.f32 %v610, %v611
        %v613 = vand.u32 %v612, 4294901760
        %614 = vmatpush1.msra.mxu0 %v613
        %615 = vmatprep.subr.mxu0 0.0
        %v616 = vand.u32 %v263, 4294901760
        %v617 = vsub.f32 %v263, %v616
        %v618 = vand.u32 %v617, 4294901760
        %v619 = vsub.f32 %v617, %v618
        %v620 = vand.u32 %v619, 4294901760
        %621 = vmatpush1.msra.mxu0 %v620
        %622 = vmatprep.subr.mxu0 0.0
        %623 = vmatpush1.msra.mxu0 0.0
        %624 = vmatprep.subr.mxu0 0.0
        %625 = vmatpush1.msra.mxu0 0.0
        %626 = vmatprep.subr.mxu0 0.0
        %627 = vmatpush1.msra.mxu0 0.0
        %628 = vmatprep.subr.mxu0 0.0
        %629 = vmatpush1.msra.mxu0 0.0
        %630 = vmatprep.subr.mxu0 0.0
        %631 = vmatpush1.msra.mxu0 0.0
        %632 = vmatprep.subr.mxu0 0.0
        %633 = vmatpush1.msra.mxu0 0.0
        %634 = vmatprep.subr.mxu0 0.0
        %635 = vmatpush1.msra.mxu0 0.0
        %636 = vmatprep.subr.mxu0 0.0
        %637 = vmatpush1.msra.mxu0 0.0
        %638 = vmatprep.subr.mxu0 0.0
        %639 = vmatpush1.msra.mxu0 0.0
        %640 = vmatprep.subr.mxu0 0.0
        %641 = vmatpush1.msra.mxu0 0.0
        %642 = vmatprep.subr.mxu0 0.0
        %643 = vmatpush1.msra.mxu0 0.0
        %644 = vmatprep.subr.mxu0 0.0
        %645 = vmatpush1.msra.mxu0 0.0
        %646 = vmatprep.subr.mxu0 0.0
        %647 = vmatpush1.msra.mxu0 0.0
        %648 = vmatprep.subr.mxu0 0.0
        %649 = vmatpush1.msra.mxu0 0.0
        %650 = vmatprep.subr.mxu0 0.0
        %651 = vmatpush1.msra.mxu0 0.0
        %652 = vmatprep.subr.mxu0 0.0
        %653 = vmatpush1.msra.mxu0 0.0
        %654 = vmatprep.mubr.f32.mxu0 0.0
        %v655 = vand.u32 %v232, 4294901760
        %656 = vmatmul.mubr.f32.gmra.mrb[0].mxu0 %v655
        %v657 = vpop.f32.mrb[0].mxu0
        %v658 = vadd.f32 %v357, %v657
        %v659 = vpop.f32.mrb[0].mxu0
        %660 = vmatprep.mubr.f32.mxu0 0.0
        %v661 = vand.u32 %v233, 4294901760
        %662 = vmatmul.mubr.f32.gmra.mrb[0].mxu0 %v661
        %v663 = vpop.f32.mrb[0].mxu0
        %v664 = vadd.f32 %v367, %v663
        %v665 = vpop.f32.mrb[0].mxu0
        %666 = vmatprep.mubr.f32.mxu0 0.0
        %v667 = vand.u32 %v234, 4294901760
        %668 = vmatmul.mubr.f32.gmra.mrb[0].mxu0 %v667
        %v669 = vpop.f32.mrb[0].mxu0
        %v670 = vadd.f32 %v377, %v669
        %v671 = vpop.f32.mrb[0].mxu0
        %672 = vmatprep.mubr.f32.mxu0 0.0
        %v673 = vand.u32 %v235, 4294901760
        %674 = vmatmul.mubr.f32.gmra.mrb[0].mxu0 %v673
        %v675 = vpop.f32.mrb[0].mxu0
        %v676 = vadd.f32 %v387, %v675
        %v677 = vpop.f32.mrb[0].mxu0
        %678 = vmatprep.mubr.f32.mxu0 0.0
        %v679 = vand.u32 %v236, 4294901760
        %680 = vmatmul.mubr.f32.gmra.mrb[0].mxu0 %v679
        %v681 = vpop.f32.mrb[0].mxu0
        %v682 = vadd.f32 %v397, %v681
        %v683 = vpop.f32.mrb[0].mxu0
        %684 = vmatprep.mubr.f32.mxu0 0.0
        %v685 = vand.u32 %v237, 4294901760
        %686 = vmatmul.mubr.f32.gmra.mrb[0].mxu0 %v685
        %v687 = vpop.f32.mrb[0].mxu0
        %v688 = vadd.f32 %v407, %v687
        %v689 = vpop.f32.mrb[0].mxu0
        %690 = vmatprep.mubr.f32.mxu0 0.0
        %v691 = vand.u32 %v238, 4294901760
        %692 = vmatmul.mubr.f32.gmra.mrb[0].mxu0 %v691
        %v693 = vpop.f32.mrb[0].mxu0
        %v694 = vadd.f32 %v417, %v693
        %v695 = vpop.f32.mrb[0].mxu0
        %696 = vmatprep.mubr.f32.mxu0 0.0
        %v697 = vand.u32 %v239, 4294901760
        %698 = vmatmul.mubr.f32.gmra.mrb[0].mxu0 %v697
        %v699 = vpop.f32.mrb[0].mxu0
        %v700 = vadd.f32 %v427, %v699
        %v701 = vpop.f32.mrb[0].mxu0
        %702 = vmatprep.mubr.f32.mxu0 0.0
        %v703 = vand.u32 %v240, 4294901760
        %704 = vmatmul.mubr.f32.gmra.mrb[0].mxu0 %v703
        %v705 = vpop.f32.mrb[0].mxu0
        %v706 = vadd.f32 %v437, %v705
        %v707 = vpop.f32.mrb[0].mxu0
        %708 = vmatprep.mubr.f32.mxu0 0.0
        %v709 = vand.u32 %v241, 4294901760
        %710 = vmatmul.mubr.f32.gmra.mrb[0].mxu0 %v709
        %v711 = vpop.f32.mrb[0].mxu0
        %v712 = vadd.f32 %v447, %v711
        %v713 = vpop.f32.mrb[0].mxu0
        %714 = vmatprep.mubr.f32.mxu0 0.0
        %v715 = vand.u32 %v242, 4294901760
        %716 = vmatmul.mubr.f32.gmra.mrb[0].mxu0 %v715
        %v717 = vpop.f32.mrb[0].mxu0
        %v718 = vadd.f32 %v457, %v717
        %v719 = vpop.f32.mrb[0].mxu0
        %720 = vmatprep.mubr.f32.mxu0 0.0
        %v721 = vand.u32 %v243, 4294901760
        %722 = vmatmul.mubr.f32.gmra.mrb[0].mxu0 %v721
        %v723 = vpop.f32.mrb[0].mxu0
        %v724 = vadd.f32 %v467, %v723
        %v725 = vpop.f32.mrb[0].mxu0
        %726 = vmatprep.mubr.f32.mxu0 0.0
        %v727 = vand.u32 %v244, 4294901760
        %728 = vmatmul.mubr.f32.gmra.mrb[0].mxu0 %v727
        %v729 = vpop.f32.mrb[0].mxu0
        %v730 = vadd.f32 %v477, %v729
        %v731 = vpop.f32.mrb[0].mxu0
        %732 = vmatprep.mubr.f32.mxu0 0.0
        %v733 = vand.u32 %v245, 4294901760
        %734 = vmatmul.mubr.f32.gmra.mrb[0].mxu0 %v733
        %v735 = vpop.f32.mrb[0].mxu0
        %v736 = vadd.f32 %v487, %v735
        %v737 = vpop.f32.mrb[0].mxu0
        %738 = vmatprep.mubr.f32.mxu0 0.0
        %v739 = vand.u32 %v246, 4294901760
        %740 = vmatmul.mubr.f32.gmra.mrb[0].mxu0 %v739
        %v741 = vpop.f32.mrb[0].mxu0
        %v742 = vadd.f32 %v497, %v741
        %v743 = vpop.f32.mrb[0].mxu0
        %744 = vmatprep.mubr.f32.mxu0 0.0
        %v745 = vand.u32 %v247, 4294901760
        %746 = vmatmul.mubr.f32.gmra.mrb[0].mxu0 %v745
        %v747 = vpop.f32.mrb[0].mxu0
        %v748 = vadd.f32 %v507, %v747
        %v749 = vpop.f32.mrb[0].mxu0
        %750 = vdwg.mxu0
        %751 = vmatprep.subr.mxu0 0.0
        %v752 = vand.u32 %v248, 4294901760
        %v753 = vsub.f32 %v248, %v752
        %754 = vmatpush1.msra.mxu0 %v753
        %755 = vmatprep.subr.mxu0 0.0
        %v756 = vand.u32 %v249, 4294901760
        %v757 = vsub.f32 %v249, %v756
        %758 = vmatpush1.msra.mxu0 %v757
        %759 = vmatprep.subr.mxu0 0.0
        %v760 = vand.u32 %v250, 4294901760
        %v761 = vsub.f32 %v250, %v760
        %762 = vmatpush1.msra.mxu0 %v761
        %763 = vmatprep.subr.mxu0 0.0
        %v764 = vand.u32 %v251, 4294901760
        %v765 = vsub.f32 %v251, %v764
        %766 = vmatpush1.msra.mxu0 %v765
        %767 = vmatprep.subr.mxu0 0.0
        %v768 = vand.u32 %v252, 4294901760
        %v769 = vsub.f32 %v252, %v768
        %770 = vmatpush1.msra.mxu0 %v769
        %771 = vmatprep.subr.mxu0 0.0
        %v772 = vand.u32 %v253, 4294901760
        %v773 = vsub.f32 %v253, %v772
        %774 = vmatpush1.msra.mxu0 %v773
        %775 = vmatprep.subr.mxu0 0.0
        %v776 = vand.u32 %v254, 4294901760
        %v777 = vsub.f32 %v254, %v776
        %778 = vmatpush1.msra.mxu0 %v777
        %779 = vmatprep.subr.mxu0 0.0
        %v780 = vand.u32 %v255, 4294901760
        %v781 = vsub.f32 %v255, %v780
        %782 = vmatpush1.msra.mxu0 %v781
        %783 = vmatprep.subr.mxu0 0.0
        %v784 = vand.u32 %v256, 4294901760
        %v785 = vsub.f32 %v256, %v784
        %786 = vmatpush1.msra.mxu0 %v785
        %787 = vmatprep.subr.mxu0 0.0
        %v788 = vand.u32 %v257, 4294901760
        %v789 = vsub.f32 %v257, %v788
        %790 = vmatpush1.msra.mxu0 %v789
        %791 = vmatprep.subr.mxu0 0.0
        %v792 = vand.u32 %v258, 4294901760
        %v793 = vsub.f32 %v258, %v792
        %794 = vmatpush1.msra.mxu0 %v793
        %795 = vmatprep.subr.mxu0 0.0
        %v796 = vand.u32 %v259, 4294901760
        %v797 = vsub.f32 %v259, %v796
        %798 = vmatpush1.msra.mxu0 %v797
        %799 = vmatprep.subr.mxu0 0.0
        %v800 = vand.u32 %v260, 4294901760
        %v801 = vsub.f32 %v260, %v800
        %802 = vmatpush1.msra.mxu0 %v801
        %803 = vmatprep.subr.mxu0 0.0
        %v804 = vand.u32 %v261, 4294901760
        %v805 = vsub.f32 %v261, %v804
        %806 = vmatpush1.msra.mxu0 %v805
        %807 = vmatprep.subr.mxu0 0.0
        %v808 = vand.u32 %v262, 4294901760
        %v809 = vsub.f32 %v262, %v808
        %810 = vmatpush1.msra.mxu0 %v809
        %811 = vmatprep.subr.mxu0 0.0
        %v812 = vand.u32 %v263, 4294901760
        %v813 = vsub.f32 %v263, %v812
        %814 = vmatpush1.msra.mxu0 %v813
        %815 = vmatprep.subr.mxu0 0.0
        %816 = vmatpush1.msra.mxu0 0.0
        %817 = vmatprep.subr.mxu0 0.0
        %818 = vmatpush1.msra.mxu0 0.0
        %819 = vmatprep.subr.mxu0 0.0
        %820 = vmatpush1.msra.mxu0 0.0
        %821 = vmatprep.subr.mxu0 0.0
        %822 = vmatpush1.msra.mxu0 0.0
        %823 = vmatprep.subr.mxu0 0.0
        %824 = vmatpush1.msra.mxu0 0.0
        %825 = vmatprep.subr.mxu0 0.0
        %826 = vmatpush1.msra.mxu0 0.0
        %827 = vmatprep.subr.mxu0 0.0
        %828 = vmatpush1.msra.mxu0 0.0
        %829 = vmatprep.subr.mxu0 0.0
        %830 = vmatpush1.msra.mxu0 0.0
        %831 = vmatprep.subr.mxu0 0.0
        %832 = vmatpush1.msra.mxu0 0.0
        %833 = vmatprep.subr.mxu0 0.0
        %834 = vmatpush1.msra.mxu0 0.0
        %835 = vmatprep.subr.mxu0 0.0
        %836 = vmatpush1.msra.mxu0 0.0
        %837 = vmatprep.subr.mxu0 0.0
        %838 = vmatpush1.msra.mxu0 0.0
        %839 = vmatprep.subr.mxu0 0.0
        %840 = vmatpush1.msra.mxu0 0.0
        %841 = vmatprep.subr.mxu0 0.0
        %842 = vmatpush1.msra.mxu0 0.0
        %843 = vmatprep.subr.mxu0 0.0
        %844 = vmatpush1.msra.mxu0 0.0
        %845 = vmatprep.subr.mxu0 0.0
        %846 = vmatpush1.msra.mxu0 0.0
        %847 = vmatprep.mubr.f32.mxu0 0.0
        %v848 = vand.u32 %v232, 4294901760
        %v849 = vsub.f32 %v232, %v848
        %850 = vmatmul.mubr.f32.gmra.mrb[0].mxu0 %v849
        %v851 = vpop.f32.mrb[0].mxu0
        %v852 = vadd.f32 %v658, %v851
        %v853 = vpop.f32.mrb[0].mxu0
        %854 = vmatprep.mubr.f32.mxu0 0.0
        %v855 = vand.u32 %v233, 4294901760
        %v856 = vsub.f32 %v233, %v855
        %857 = vmatmul.mubr.f32.gmra.mrb[0].mxu0 %v856
        %v858 = vpop.f32.mrb[0].mxu0
        %v859 = vadd.f32 %v664, %v858
        %v860 = vpop.f32.mrb[0].mxu0
        %861 = vmatprep.mubr.f32.mxu0 0.0
        %v862 = vand.u32 %v234, 4294901760
        %v863 = vsub.f32 %v234, %v862
        %864 = vmatmul.mubr.f32.gmra.mrb[0].mxu0 %v863
        %v865 = vpop.f32.mrb[0].mxu0
        %v866 = vadd.f32 %v670, %v865
        %v867 = vpop.f32.mrb[0].mxu0
        %868 = vmatprep.mubr.f32.mxu0 0.0
        %v869 = vand.u32 %v235, 4294901760
        %v870 = vsub.f32 %v235, %v869
        %871 = vmatmul.mubr.f32.gmra.mrb[0].mxu0 %v870
        %v872 = vpop.f32.mrb[0].mxu0
        %v873 = vadd.f32 %v676, %v872
        %v874 = vpop.f32.mrb[0].mxu0
        %875 = vmatprep.mubr.f32.mxu0 0.0
        %v876 = vand.u32 %v236, 4294901760
        %v877 = vsub.f32 %v236, %v876
        %878 = vmatmul.mubr.f32.gmra.mrb[0].mxu0 %v877
        %v879 = vpop.f32.mrb[0].mxu0
        %v880 = vadd.f32 %v682, %v879
        %v881 = vpop.f32.mrb[0].mxu0
        %882 = vmatprep.mubr.f32.mxu0 0.0
        %v883 = vand.u32 %v237, 4294901760
        %v884 = vsub.f32 %v237, %v883
        %885 = vmatmul.mubr.f32.gmra.mrb[0].mxu0 %v884
        %v886 = vpop.f32.mrb[0].mxu0
        %v887 = vadd.f32 %v688, %v886
        %v888 = vpop.f32.mrb[0].mxu0
        %889 = vmatprep.mubr.f32.mxu0 0.0
        %v890 = vand.u32 %v238, 4294901760
        %v891 = vsub.f32 %v238, %v890
        %892 = vmatmul.mubr.f32.gmra.mrb[0].mxu0 %v891
        %v893 = vpop.f32.mrb[0].mxu0
        %v894 = vadd.f32 %v694, %v893
        %v895 = vpop.f32.mrb[0].mxu0
        %896 = vmatprep.mubr.f32.mxu0 0.0
        %v897 = vand.u32 %v239, 4294901760
        %v898 = vsub.f32 %v239, %v897
        %899 = vmatmul.mubr.f32.gmra.mrb[0].mxu0 %v898
        %v900 = vpop.f32.mrb[0].mxu0
        %v901 = vadd.f32 %v700, %v900
        %v902 = vpop.f32.mrb[0].mxu0
        %903 = vmatprep.mubr.f32.mxu0 0.0
        %v904 = vand.u32 %v240, 4294901760
        %v905 = vsub.f32 %v240, %v904
        %906 = vmatmul.mubr.f32.gmra.mrb[0].mxu0 %v905
        %v907 = vpop.f32.mrb[0].mxu0
        %v908 = vadd.f32 %v706, %v907
        %v909 = vpop.f32.mrb[0].mxu0
        %910 = vmatprep.mubr.f32.mxu0 0.0
        %v911 = vand.u32 %v241, 4294901760
        %v912 = vsub.f32 %v241, %v911
        %913 = vmatmul.mubr.f32.gmra.mrb[0].mxu0 %v912
        %v914 = vpop.f32.mrb[0].mxu0
        %v915 = vadd.f32 %v712, %v914
        %v916 = vpop.f32.mrb[0].mxu0
        %917 = vmatprep.mubr.f32.mxu0 0.0
        %v918 = vand.u32 %v242, 4294901760
        %v919 = vsub.f32 %v242, %v918
        %920 = vmatmul.mubr.f32.gmra.mrb[0].mxu0 %v919
        %v921 = vpop.f32.mrb[0].mxu0
        %v922 = vadd.f32 %v718, %v921
        %v923 = vpop.f32.mrb[0].mxu0
        %924 = vmatprep.mubr.f32.mxu0 0.0
        %v925 = vand.u32 %v243, 4294901760
        %v926 = vsub.f32 %v243, %v925
        %927 = vmatmul.mubr.f32.gmra.mrb[0].mxu0 %v926
        %v928 = vpop.f32.mrb[0].mxu0
        %v929 = vadd.f32 %v724, %v928
        %v930 = vpop.f32.mrb[0].mxu0
        %931 = vmatprep.mubr.f32.mxu0 0.0
        %v932 = vand.u32 %v244, 4294901760
        %v933 = vsub.f32 %v244, %v932
        %934 = vmatmul.mubr.f32.gmra.mrb[0].mxu0 %v933
        %v935 = vpop.f32.mrb[0].mxu0
        %v936 = vadd.f32 %v730, %v935
        %v937 = vpop.f32.mrb[0].mxu0
        %938 = vmatprep.mubr.f32.mxu0 0.0
        %v939 = vand.u32 %v245, 4294901760
        %v940 = vsub.f32 %v245, %v939
        %941 = vmatmul.mubr.f32.gmra.mrb[0].mxu0 %v940
        %v942 = vpop.f32.mrb[0].mxu0
        %v943 = vadd.f32 %v736, %v942
        %v944 = vpop.f32.mrb[0].mxu0
        %945 = vmatprep.mubr.f32.mxu0 0.0
        %v946 = vand.u32 %v246, 4294901760
        %v947 = vsub.f32 %v246, %v946
        %948 = vmatmul.mubr.f32.gmra.mrb[0].mxu0 %v947
        %v949 = vpop.f32.mrb[0].mxu0
        %v950 = vadd.f32 %v742, %v949
        %v951 = vpop.f32.mrb[0].mxu0
        %952 = vmatprep.mubr.f32.mxu0 0.0
        %v953 = vand.u32 %v247, 4294901760
        %v954 = vsub.f32 %v247, %v953
        %955 = vmatmul.mubr.f32.gmra.mrb[0].mxu0 %v954
        %v956 = vpop.f32.mrb[0].mxu0
        %v957 = vadd.f32 %v748, %v956
        %v958 = vpop.f32.mrb[0].mxu0
        %959 = vdwg.mxu0
        %960 = vmatprep.subr.mxu0 0.0
        %v961 = vand.u32 %v248, 4294901760
        %962 = vmatpush1.msra.mxu0 %v961
        %963 = vmatprep.subr.mxu0 0.0
        %v964 = vand.u32 %v249, 4294901760
        %965 = vmatpush1.msra.mxu0 %v964
        %966 = vmatprep.subr.mxu0 0.0
        %v967 = vand.u32 %v250, 4294901760
        %968 = vmatpush1.msra.mxu0 %v967
        %969 = vmatprep.subr.mxu0 0.0
        %v970 = vand.u32 %v251, 4294901760
        %971 = vmatpush1.msra.mxu0 %v970
        %972 = vmatprep.subr.mxu0 0.0
        %v973 = vand.u32 %v252, 4294901760
        %974 = vmatpush1.msra.mxu0 %v973
        %975 = vmatprep.subr.mxu0 0.0
        %v976 = vand.u32 %v253, 4294901760
        %977 = vmatpush1.msra.mxu0 %v976
        %978 = vmatprep.subr.mxu0 0.0
        %v979 = vand.u32 %v254, 4294901760
        %980 = vmatpush1.msra.mxu0 %v979
        %981 = vmatprep.subr.mxu0 0.0
        %v982 = vand.u32 %v255, 4294901760
        %983 = vmatpush1.msra.mxu0 %v982
        %984 = vmatprep.subr.mxu0 0.0
        %v985 = vand.u32 %v256, 4294901760
        %986 = vmatpush1.msra.mxu0 %v985
        %987 = vmatprep.subr.mxu0 0.0
        %v988 = vand.u32 %v257, 4294901760
        %989 = vmatpush1.msra.mxu0 %v988
        %990 = vmatprep.subr.mxu0 0.0
        %v991 = vand.u32 %v258, 4294901760
        %992 = vmatpush1.msra.mxu0 %v991
        %993 = vmatprep.subr.mxu0 0.0
        %v994 = vand.u32 %v259, 4294901760
        %995 = vmatpush1.msra.mxu0 %v994
        %996 = vmatprep.subr.mxu0 0.0
        %v997 = vand.u32 %v260, 4294901760
        %998 = vmatpush1.msra.mxu0 %v997
        %999 = vmatprep.subr.mxu0 0.0
        %v1000 = vand.u32 %v261, 4294901760
        %1001 = vmatpush1.msra.mxu0 %v1000
        %1002 = vmatprep.subr.mxu0 0.0
        %v1003 = vand.u32 %v262, 4294901760
        %1004 = vmatpush1.msra.mxu0 %v1003
        %1005 = vmatprep.subr.mxu0 0.0
        %v1006 = vand.u32 %v263, 4294901760
        %1007 = vmatpush1.msra.mxu0 %v1006
        %1008 = vmatprep.subr.mxu0 0.0
        %1009 = vmatpush1.msra.mxu0 0.0
        %1010 = vmatprep.subr.mxu0 0.0
        %1011 = vmatpush1.msra.mxu0 0.0
        %1012 = vmatprep.subr.mxu0 0.0
        %1013 = vmatpush1.msra.mxu0 0.0
        %1014 = vmatprep.subr.mxu0 0.0
        %1015 = vmatpush1.msra.mxu0 0.0
        %1016 = vmatprep.subr.mxu0 0.0
        %1017 = vmatpush1.msra.mxu0 0.0
        %1018 = vmatprep.subr.mxu0 0.0
        %1019 = vmatpush1.msra.mxu0 0.0
        %1020 = vmatprep.subr.mxu0 0.0
        %1021 = vmatpush1.msra.mxu0 0.0
        %1022 = vmatprep.subr.mxu0 0.0
        %1023 = vmatpush1.msra.mxu0 0.0
        %1024 = vmatprep.subr.mxu0 0.0
        %1025 = vmatpush1.msra.mxu0 0.0
        %1026 = vmatprep.subr.mxu0 0.0
        %1027 = vmatpush1.msra.mxu0 0.0
        %1028 = vmatprep.subr.mxu0 0.0
        %1029 = vmatpush1.msra.mxu0 0.0
        %1030 = vmatprep.subr.mxu0 0.0
        %1031 = vmatpush1.msra.mxu0 0.0
        %1032 = vmatprep.subr.mxu0 0.0
        %1033 = vmatpush1.msra.mxu0 0.0
        %1034 = vmatprep.subr.mxu0 0.0
        %1035 = vmatpush1.msra.mxu0 0.0
        %1036 = vmatprep.subr.mxu0 0.0
        %1037 = vmatpush1.msra.mxu0 0.0
        %1038 = vmatprep.subr.mxu0 0.0
        %1039 = vmatpush1.msra.mxu0 0.0
        %1040 = vmatprep.mubr.f32.mxu0 0.0
        %v1041 = vand.u32 %v232, 4294901760
        %v1042 = vsub.f32 %v232, %v1041
        %v1043 = vand.u32 %v1042, 4294901760
        %1044 = vmatmul.mubr.f32.gmra.mrb[0].mxu0 %v1043
        %v1045 = vpop.f32.mrb[0].mxu0
        %v1046 = vadd.f32 %v852, %v1045
        %v1047 = vpop.f32.mrb[0].mxu0
        %1048 = vmatprep.mubr.f32.mxu0 0.0
        %v1049 = vand.u32 %v233, 4294901760
        %v1050 = vsub.f32 %v233, %v1049
        %v1051 = vand.u32 %v1050, 4294901760
        %1052 = vmatmul.mubr.f32.gmra.mrb[0].mxu0 %v1051
        %v1053 = vpop.f32.mrb[0].mxu0
        %v1054 = vadd.f32 %v859, %v1053
        %v1055 = vpop.f32.mrb[0].mxu0
        %1056 = vmatprep.mubr.f32.mxu0 0.0
        %v1057 = vand.u32 %v234, 4294901760
        %v1058 = vsub.f32 %v234, %v1057
        %v1059 = vand.u32 %v1058, 4294901760
        %1060 = vmatmul.mubr.f32.gmra.mrb[0].mxu0 %v1059
        %v1061 = vpop.f32.mrb[0].mxu0
        %v1062 = vadd.f32 %v866, %v1061
        %v1063 = vpop.f32.mrb[0].mxu0
        %1064 = vmatprep.mubr.f32.mxu0 0.0
        %v1065 = vand.u32 %v235, 4294901760
        %v1066 = vsub.f32 %v235, %v1065
        %v1067 = vand.u32 %v1066, 4294901760
        %1068 = vmatmul.mubr.f32.gmra.mrb[0].mxu0 %v1067
        %v1069 = vpop.f32.mrb[0].mxu0
        %v1070 = vadd.f32 %v873, %v1069
        %v1071 = vpop.f32.mrb[0].mxu0
        %1072 = vmatprep.mubr.f32.mxu0 0.0
        %v1073 = vand.u32 %v236, 4294901760
        %v1074 = vsub.f32 %v236, %v1073
        %v1075 = vand.u32 %v1074, 4294901760
        %1076 = vmatmul.mubr.f32.gmra.mrb[0].mxu0 %v1075
        %v1077 = vpop.f32.mrb[0].mxu0
        %v1078 = vadd.f32 %v880, %v1077
        %v1079 = vpop.f32.mrb[0].mxu0
        %1080 = vmatprep.mubr.f32.mxu0 0.0
        %v1081 = vand.u32 %v237, 4294901760
        %v1082 = vsub.f32 %v237, %v1081
        %v1083 = vand.u32 %v1082, 4294901760
        %1084 = vmatmul.mubr.f32.gmra.mrb[0].mxu0 %v1083
        %v1085 = vpop.f32.mrb[0].mxu0
        %v1086 = vadd.f32 %v887, %v1085
        %v1087 = vpop.f32.mrb[0].mxu0
        %1088 = vmatprep.mubr.f32.mxu0 0.0
        %v1089 = vand.u32 %v238, 4294901760
        %v1090 = vsub.f32 %v238, %v1089
        %v1091 = vand.u32 %v1090, 4294901760
        %1092 = vmatmul.mubr.f32.gmra.mrb[0].mxu0 %v1091
        %v1093 = vpop.f32.mrb[0].mxu0
        %v1094 = vadd.f32 %v894, %v1093
        %v1095 = vpop.f32.mrb[0].mxu0
        %1096 = vmatprep.mubr.f32.mxu0 0.0
        %v1097 = vand.u32 %v239, 4294901760
        %v1098 = vsub.f32 %v239, %v1097
        %v1099 = vand.u32 %v1098, 4294901760
        %1100 = vmatmul.mubr.f32.gmra.mrb[0].mxu0 %v1099
        %v1101 = vpop.f32.mrb[0].mxu0
        %v1102 = vadd.f32 %v901, %v1101
        %v1103 = vpop.f32.mrb[0].mxu0
        %1104 = vmatprep.mubr.f32.mxu0 0.0
        %v1105 = vand.u32 %v240, 4294901760
        %v1106 = vsub.f32 %v240, %v1105
        %v1107 = vand.u32 %v1106, 4294901760
        %1108 = vmatmul.mubr.f32.gmra.mrb[0].mxu0 %v1107
        %v1109 = vpop.f32.mrb[0].mxu0
        %v1110 = vadd.f32 %v908, %v1109
        %v1111 = vpop.f32.mrb[0].mxu0
        %1112 = vmatprep.mubr.f32.mxu0 0.0
        %v1113 = vand.u32 %v241, 4294901760
        %v1114 = vsub.f32 %v241, %v1113
        %v1115 = vand.u32 %v1114, 4294901760
        %1116 = vmatmul.mubr.f32.gmra.mrb[0].mxu0 %v1115
        %v1117 = vpop.f32.mrb[0].mxu0
        %v1118 = vadd.f32 %v915, %v1117
        %v1119 = vpop.f32.mrb[0].mxu0
        %1120 = vmatprep.mubr.f32.mxu0 0.0
        %v1121 = vand.u32 %v242, 4294901760
        %v1122 = vsub.f32 %v242, %v1121
        %v1123 = vand.u32 %v1122, 4294901760
        %1124 = vmatmul.mubr.f32.gmra.mrb[0].mxu0 %v1123
        %v1125 = vpop.f32.mrb[0].mxu0
        %v1126 = vadd.f32 %v922, %v1125
        %v1127 = vpop.f32.mrb[0].mxu0
        %1128 = vmatprep.mubr.f32.mxu0 0.0
        %v1129 = vand.u32 %v243, 4294901760
        %v1130 = vsub.f32 %v243, %v1129
        %v1131 = vand.u32 %v1130, 4294901760
        %1132 = vmatmul.mubr.f32.gmra.mrb[0].mxu0 %v1131
        %v1133 = vpop.f32.mrb[0].mxu0
        %v1134 = vadd.f32 %v929, %v1133
        %v1135 = vpop.f32.mrb[0].mxu0
        %1136 = vmatprep.mubr.f32.mxu0 0.0
        %v1137 = vand.u32 %v244, 4294901760
        %v1138 = vsub.f32 %v244, %v1137
        %v1139 = vand.u32 %v1138, 4294901760
        %1140 = vmatmul.mubr.f32.gmra.mrb[0].mxu0 %v1139
        %v1141 = vpop.f32.mrb[0].mxu0
        %v1142 = vadd.f32 %v936, %v1141
        %v1143 = vpop.f32.mrb[0].mxu0
        %1144 = vmatprep.mubr.f32.mxu0 0.0
        %v1145 = vand.u32 %v245, 4294901760
        %v1146 = vsub.f32 %v245, %v1145
        %v1147 = vand.u32 %v1146, 4294901760
        %1148 = vmatmul.mubr.f32.gmra.mrb[0].mxu0 %v1147
        %v1149 = vpop.f32.mrb[0].mxu0
        %v1150 = vadd.f32 %v943, %v1149
        %v1151 = vpop.f32.mrb[0].mxu0
        %1152 = vmatprep.mubr.f32.mxu0 0.0
        %v1153 = vand.u32 %v246, 4294901760
        %v1154 = vsub.f32 %v246, %v1153
        %v1155 = vand.u32 %v1154, 4294901760
        %1156 = vmatmul.mubr.f32.gmra.mrb[0].mxu0 %v1155
        %v1157 = vpop.f32.mrb[0].mxu0
        %v1158 = vadd.f32 %v950, %v1157
        %v1159 = vpop.f32.mrb[0].mxu0
        %1160 = vmatprep.mubr.f32.mxu0 0.0
        %v1161 = vand.u32 %v247, 4294901760
        %v1162 = vsub.f32 %v247, %v1161
        %v1163 = vand.u32 %v1162, 4294901760
        %1164 = vmatmul.mubr.f32.gmra.mrb[0].mxu0 %v1163
        %v1165 = vpop.f32.mrb[0].mxu0
        %v1166 = vadd.f32 %v957, %v1165
        %v1167 = vpop.f32.mrb[0].mxu0
        %1168 = vdwg.mxu0
        %1169 = vmatprep.subr.mxu0 0.0
        %v1170 = vand.u32 %v248, 4294901760
        %v1171 = vsub.f32 %v248, %v1170
        %v1172 = vand.u32 %v1171, 4294901760
        %1173 = vmatpush1.msra.mxu0 %v1172
        %1174 = vmatprep.subr.mxu0 0.0
        %v1175 = vand.u32 %v249, 4294901760
        %v1176 = vsub.f32 %v249, %v1175
        %v1177 = vand.u32 %v1176, 4294901760
        %1178 = vmatpush1.msra.mxu0 %v1177
        %1179 = vmatprep.subr.mxu0 0.0
        %v1180 = vand.u32 %v250, 4294901760
        %v1181 = vsub.f32 %v250, %v1180
        %v1182 = vand.u32 %v1181, 4294901760
        %1183 = vmatpush1.msra.mxu0 %v1182
        %1184 = vmatprep.subr.mxu0 0.0
        %v1185 = vand.u32 %v251, 4294901760
        %v1186 = vsub.f32 %v251, %v1185
        %v1187 = vand.u32 %v1186, 4294901760
        %1188 = vmatpush1.msra.mxu0 %v1187
        %1189 = vmatprep.subr.mxu0 0.0
        %v1190 = vand.u32 %v252, 4294901760
        %v1191 = vsub.f32 %v252, %v1190
        %v1192 = vand.u32 %v1191, 4294901760
        %1193 = vmatpush1.msra.mxu0 %v1192
        %1194 = vmatprep.subr.mxu0 0.0
        %v1195 = vand.u32 %v253, 4294901760
        %v1196 = vsub.f32 %v253, %v1195
        %v1197 = vand.u32 %v1196, 4294901760
        %1198 = vmatpush1.msra.mxu0 %v1197
        %1199 = vmatprep.subr.mxu0 0.0
        %v1200 = vand.u32 %v254, 4294901760
        %v1201 = vsub.f32 %v254, %v1200
        %v1202 = vand.u32 %v1201, 4294901760
        %1203 = vmatpush1.msra.mxu0 %v1202
        %1204 = vmatprep.subr.mxu0 0.0
        %v1205 = vand.u32 %v255, 4294901760
        %v1206 = vsub.f32 %v255, %v1205
        %v1207 = vand.u32 %v1206, 4294901760
        %1208 = vmatpush1.msra.mxu0 %v1207
        %1209 = vmatprep.subr.mxu0 0.0
        %v1210 = vand.u32 %v256, 4294901760
        %v1211 = vsub.f32 %v256, %v1210
        %v1212 = vand.u32 %v1211, 4294901760
        %1213 = vmatpush1.msra.mxu0 %v1212
        %1214 = vmatprep.subr.mxu0 0.0
        %v1215 = vand.u32 %v257, 4294901760
        %v1216 = vsub.f32 %v257, %v1215
        %v1217 = vand.u32 %v1216, 4294901760
        %1218 = vmatpush1.msra.mxu0 %v1217
        %1219 = vmatprep.subr.mxu0 0.0
        %v1220 = vand.u32 %v258, 4294901760
        %v1221 = vsub.f32 %v258, %v1220
        %v1222 = vand.u32 %v1221, 4294901760
        %1223 = vmatpush1.msra.mxu0 %v1222
        %1224 = vmatprep.subr.mxu0 0.0
        %v1225 = vand.u32 %v259, 4294901760
        %v1226 = vsub.f32 %v259, %v1225
        %v1227 = vand.u32 %v1226, 4294901760
        %1228 = vmatpush1.msra.mxu0 %v1227
        %1229 = vmatprep.subr.mxu0 0.0
        %v1230 = vand.u32 %v260, 4294901760
        %v1231 = vsub.f32 %v260, %v1230
        %v1232 = vand.u32 %v1231, 4294901760
        %1233 = vmatpush1.msra.mxu0 %v1232
        %1234 = vmatprep.subr.mxu0 0.0
        %v1235 = vand.u32 %v261, 4294901760
        %v1236 = vsub.f32 %v261, %v1235
        %v1237 = vand.u32 %v1236, 4294901760
        %1238 = vmatpush1.msra.mxu0 %v1237
        %1239 = vmatprep.subr.mxu0 0.0
        %v1240 = vand.u32 %v262, 4294901760
        %v1241 = vsub.f32 %v262, %v1240
        %v1242 = vand.u32 %v1241, 4294901760
        %1243 = vmatpush1.msra.mxu0 %v1242
        %1244 = vmatprep.subr.mxu0 0.0
        %v1245 = vand.u32 %v263, 4294901760
        %v1246 = vsub.f32 %v263, %v1245
        %v1247 = vand.u32 %v1246, 4294901760
        %1248 = vmatpush1.msra.mxu0 %v1247
        %1249 = vmatprep.subr.mxu0 0.0
        %1250 = vmatpush1.msra.mxu0 0.0
        %1251 = vmatprep.subr.mxu0 0.0
        %1252 = vmatpush1.msra.mxu0 0.0
        %1253 = vmatprep.subr.mxu0 0.0
        %1254 = vmatpush1.msra.mxu0 0.0
        %1255 = vmatprep.subr.mxu0 0.0
        %1256 = vmatpush1.msra.mxu0 0.0
        %1257 = vmatprep.subr.mxu0 0.0
        %1258 = vmatpush1.msra.mxu0 0.0
        %1259 = vmatprep.subr.mxu0 0.0
        %1260 = vmatpush1.msra.mxu0 0.0
        %1261 = vmatprep.subr.mxu0 0.0
        %1262 = vmatpush1.msra.mxu0 0.0
        %1263 = vmatprep.subr.mxu0 0.0
        %1264 = vmatpush1.msra.mxu0 0.0
        %1265 = vmatprep.subr.mxu0 0.0
        %1266 = vmatpush1.msra.mxu0 0.0
        %1267 = vmatprep.subr.mxu0 0.0
        %1268 = vmatpush1.msra.mxu0 0.0
        %1269 = vmatprep.subr.mxu0 0.0
        %1270 = vmatpush1.msra.mxu0 0.0
        %1271 = vmatprep.subr.mxu0 0.0
        %1272 = vmatpush1.msra.mxu0 0.0
        %1273 = vmatprep.subr.mxu0 0.0
        %1274 = vmatpush1.msra.mxu0 0.0
        %1275 = vmatprep.subr.mxu0 0.0
        %1276 = vmatpush1.msra.mxu0 0.0
        %1277 = vmatprep.subr.mxu0 0.0
        %1278 = vmatpush1.msra.mxu0 0.0
        %1279 = vmatprep.subr.mxu0 0.0
        %1280 = vmatpush1.msra.mxu0 0.0
        %1281 = vmatprep.mubr.f32.mxu0 0.0
        %v1282 = vand.u32 %v232, 4294901760
        %1283 = vmatmul.mubr.f32.gmra.mrb[0].mxu0 %v1282
        %v1284 = vpop.f32.mrb[0].mxu0
        %v1285 = vadd.f32 %v1046, %v1284
        %v1286 = vpop.f32.mrb[0].mxu0
        %1287 = vmatprep.mubr.f32.mxu0 0.0
        %v1288 = vand.u32 %v233, 4294901760
        %1289 = vmatmul.mubr.f32.gmra.mrb[0].mxu0 %v1288
        %v1290 = vpop.f32.mrb[0].mxu0
        %v1291 = vadd.f32 %v1054, %v1290
        %v1292 = vpop.f32.mrb[0].mxu0
        %1293 = vmatprep.mubr.f32.mxu0 0.0
        %v1294 = vand.u32 %v234, 4294901760
        %1295 = vmatmul.mubr.f32.gmra.mrb[0].mxu0 %v1294
        %v1296 = vpop.f32.mrb[0].mxu0
        %v1297 = vadd.f32 %v1062, %v1296
        %v1298 = vpop.f32.mrb[0].mxu0
        %1299 = vmatprep.mubr.f32.mxu0 0.0
        %v1300 = vand.u32 %v235, 4294901760
        %1301 = vmatmul.mubr.f32.gmra.mrb[0].mxu0 %v1300
        %v1302 = vpop.f32.mrb[0].mxu0
        %v1303 = vadd.f32 %v1070, %v1302
        %v1304 = vpop.f32.mrb[0].mxu0
        %1305 = vmatprep.mubr.f32.mxu0 0.0
        %v1306 = vand.u32 %v236, 4294901760
        %1307 = vmatmul.mubr.f32.gmra.mrb[0].mxu0 %v1306
        %v1308 = vpop.f32.mrb[0].mxu0
        %v1309 = vadd.f32 %v1078, %v1308
        %v1310 = vpop.f32.mrb[0].mxu0
        %1311 = vmatprep.mubr.f32.mxu0 0.0
        %v1312 = vand.u32 %v237, 4294901760
        %1313 = vmatmul.mubr.f32.gmra.mrb[0].mxu0 %v1312
        %v1314 = vpop.f32.mrb[0].mxu0
        %v1315 = vadd.f32 %v1086, %v1314
        %v1316 = vpop.f32.mrb[0].mxu0
        %1317 = vmatprep.mubr.f32.mxu0 0.0
        %v1318 = vand.u32 %v238, 4294901760
        %1319 = vmatmul.mubr.f32.gmra.mrb[0].mxu0 %v1318
        %v1320 = vpop.f32.mrb[0].mxu0
        %v1321 = vadd.f32 %v1094, %v1320
        %v1322 = vpop.f32.mrb[0].mxu0
        %1323 = vmatprep.mubr.f32.mxu0 0.0
        %v1324 = vand.u32 %v239, 4294901760
        %1325 = vmatmul.mubr.f32.gmra.mrb[0].mxu0 %v1324
        %v1326 = vpop.f32.mrb[0].mxu0
        %v1327 = vadd.f32 %v1102, %v1326
        %v1328 = vpop.f32.mrb[0].mxu0
        %1329 = vmatprep.mubr.f32.mxu0 0.0
        %v1330 = vand.u32 %v240, 4294901760
        %1331 = vmatmul.mubr.f32.gmra.mrb[0].mxu0 %v1330
        %v1332 = vpop.f32.mrb[0].mxu0
        %v1333 = vadd.f32 %v1110, %v1332
        %v1334 = vpop.f32.mrb[0].mxu0
        %1335 = vmatprep.mubr.f32.mxu0 0.0
        %v1336 = vand.u32 %v241, 4294901760
        %1337 = vmatmul.mubr.f32.gmra.mrb[0].mxu0 %v1336
        %v1338 = vpop.f32.mrb[0].mxu0
        %v1339 = vadd.f32 %v1118, %v1338
        %v1340 = vpop.f32.mrb[0].mxu0
        %1341 = vmatprep.mubr.f32.mxu0 0.0
        %v1342 = vand.u32 %v242, 4294901760
        %1343 = vmatmul.mubr.f32.gmra.mrb[0].mxu0 %v1342
        %v1344 = vpop.f32.mrb[0].mxu0
        %v1345 = vadd.f32 %v1126, %v1344
        %v1346 = vpop.f32.mrb[0].mxu0
        %1347 = vmatprep.mubr.f32.mxu0 0.0
        %v1348 = vand.u32 %v243, 4294901760
        %1349 = vmatmul.mubr.f32.gmra.mrb[0].mxu0 %v1348
        %v1350 = vpop.f32.mrb[0].mxu0
        %v1351 = vadd.f32 %v1134, %v1350
        %v1352 = vpop.f32.mrb[0].mxu0
        %1353 = vmatprep.mubr.f32.mxu0 0.0
        %v1354 = vand.u32 %v244, 4294901760
        %1355 = vmatmul.mubr.f32.gmra.mrb[0].mxu0 %v1354
        %v1356 = vpop.f32.mrb[0].mxu0
        %v1357 = vadd.f32 %v1142, %v1356
        %v1358 = vpop.f32.mrb[0].mxu0
        %1359 = vmatprep.mubr.f32.mxu0 0.0
        %v1360 = vand.u32 %v245, 4294901760
        %1361 = vmatmul.mubr.f32.gmra.mrb[0].mxu0 %v1360
        %v1362 = vpop.f32.mrb[0].mxu0
        %v1363 = vadd.f32 %v1150, %v1362
        %v1364 = vpop.f32.mrb[0].mxu0
        %1365 = vmatprep.mubr.f32.mxu0 0.0
        %v1366 = vand.u32 %v246, 4294901760
        %1367 = vmatmul.mubr.f32.gmra.mrb[0].mxu0 %v1366
        %v1368 = vpop.f32.mrb[0].mxu0
        %v1369 = vadd.f32 %v1158, %v1368
        %v1370 = vpop.f32.mrb[0].mxu0
        %1371 = vmatprep.mubr.f32.mxu0 0.0
        %v1372 = vand.u32 %v247, 4294901760
        %1373 = vmatmul.mubr.f32.gmra.mrb[0].mxu0 %v1372
        %v1374 = vpop.f32.mrb[0].mxu0
        %v1375 = vadd.f32 %v1166, %v1374
        %v1376 = vpop.f32.mrb[0].mxu0
        %1377 = vdwg.mxu0
        %1378 = vmatprep.subr.mxu0 0.0
        %v1379 = vand.u32 %v248, 4294901760
        %1380 = vmatpush1.msra.mxu0 %v1379
        %1381 = vmatprep.subr.mxu0 0.0
        %v1382 = vand.u32 %v249, 4294901760
        %1383 = vmatpush1.msra.mxu0 %v1382
        %1384 = vmatprep.subr.mxu0 0.0
        %v1385 = vand.u32 %v250, 4294901760
        %1386 = vmatpush1.msra.mxu0 %v1385
        %1387 = vmatprep.subr.mxu0 0.0
        %v1388 = vand.u32 %v251, 4294901760
        %1389 = vmatpush1.msra.mxu0 %v1388
        %1390 = vmatprep.subr.mxu0 0.0
        %v1391 = vand.u32 %v252, 4294901760
        %1392 = vmatpush1.msra.mxu0 %v1391
        %1393 = vmatprep.subr.mxu0 0.0
        %v1394 = vand.u32 %v253, 4294901760
        %1395 = vmatpush1.msra.mxu0 %v1394
        %1396 = vmatprep.subr.mxu0 0.0
        %v1397 = vand.u32 %v254, 4294901760
        %1398 = vmatpush1.msra.mxu0 %v1397
        %1399 = vmatprep.subr.mxu0 0.0
        %v1400 = vand.u32 %v255, 4294901760
        %1401 = vmatpush1.msra.mxu0 %v1400
        %1402 = vmatprep.subr.mxu0 0.0
        %v1403 = vand.u32 %v256, 4294901760
        %1404 = vmatpush1.msra.mxu0 %v1403
        %1405 = vmatprep.subr.mxu0 0.0
        %v1406 = vand.u32 %v257, 4294901760
        %1407 = vmatpush1.msra.mxu0 %v1406
        %1408 = vmatprep.subr.mxu0 0.0
        %v1409 = vand.u32 %v258, 4294901760
        %1410 = vmatpush1.msra.mxu0 %v1409
        %1411 = vmatprep.subr.mxu0 0.0
        %v1412 = vand.u32 %v259, 4294901760
        %1413 = vmatpush1.msra.mxu0 %v1412
        %1414 = vmatprep.subr.mxu0 0.0
        %v1415 = vand.u32 %v260, 4294901760
        %1416 = vmatpush1.msra.mxu0 %v1415
        %1417 = vmatprep.subr.mxu0 0.0
        %v1418 = vand.u32 %v261, 4294901760
        %1419 = vmatpush1.msra.mxu0 %v1418
        %1420 = vmatprep.subr.mxu0 0.0
        %v1421 = vand.u32 %v262, 4294901760
        %1422 = vmatpush1.msra.mxu0 %v1421
        %1423 = vmatprep.subr.mxu0 0.0
        %v1424 = vand.u32 %v263, 4294901760
        %1425 = vmatpush1.msra.mxu0 %v1424
        %1426 = vmatprep.subr.mxu0 0.0
        %1427 = vmatpush1.msra.mxu0 0.0
        %1428 = vmatprep.subr.mxu0 0.0
        %1429 = vmatpush1.msra.mxu0 0.0
        %1430 = vmatprep.subr.mxu0 0.0
        %1431 = vmatpush1.msra.mxu0 0.0
        %1432 = vmatprep.subr.mxu0 0.0
        %1433 = vmatpush1.msra.mxu0 0.0
        %1434 = vmatprep.subr.mxu0 0.0
        %1435 = vmatpush1.msra.mxu0 0.0
        %1436 = vmatprep.subr.mxu0 0.0
        %1437 = vmatpush1.msra.mxu0 0.0
        %1438 = vmatprep.subr.mxu0 0.0
        %1439 = vmatpush1.msra.mxu0 0.0
        %1440 = vmatprep.subr.mxu0 0.0
        %1441 = vmatpush1.msra.mxu0 0.0
        %1442 = vmatprep.subr.mxu0 0.0
        %1443 = vmatpush1.msra.mxu0 0.0
        %1444 = vmatprep.subr.mxu0 0.0
        %1445 = vmatpush1.msra.mxu0 0.0
        %1446 = vmatprep.subr.mxu0 0.0
        %1447 = vmatpush1.msra.mxu0 0.0
        %1448 = vmatprep.subr.mxu0 0.0
        %1449 = vmatpush1.msra.mxu0 0.0
        %1450 = vmatprep.subr.mxu0 0.0
        %1451 = vmatpush1.msra.mxu0 0.0
        %1452 = vmatprep.subr.mxu0 0.0
        %1453 = vmatpush1.msra.mxu0 0.0
        %1454 = vmatprep.subr.mxu0 0.0
        %1455 = vmatpush1.msra.mxu0 0.0
        %1456 = vmatprep.subr.mxu0 0.0
        %1457 = vmatpush1.msra.mxu0 0.0
        %1458 = vmatprep.mubr.f32.mxu0 0.0
        %v1459 = vand.u32 %v232, 4294901760
        %1460 = vmatmul.mubr.f32.gmra.mrb[0].mxu0 %v1459
        %v1461 = vpop.f32.mrb[0].mxu0
        %v1462 = vadd.f32 %v1285, %v1461
        %v1463 = vpop.f32.mrb[0].mxu0
        %1464 = vmatprep.mubr.f32.mxu0 0.0
        %v1465 = vand.u32 %v233, 4294901760
        %1466 = vmatmul.mubr.f32.gmra.mrb[0].mxu0 %v1465
        %v1467 = vpop.f32.mrb[0].mxu0
        %v1468 = vadd.f32 %v1291, %v1467
        %v1469 = vpop.f32.mrb[0].mxu0
        %1470 = vmatprep.mubr.f32.mxu0 0.0
        %v1471 = vand.u32 %v234, 4294901760
        %1472 = vmatmul.mubr.f32.gmra.mrb[0].mxu0 %v1471
        %v1473 = vpop.f32.mrb[0].mxu0
        %v1474 = vadd.f32 %v1297, %v1473
        %v1475 = vpop.f32.mrb[0].mxu0
        %1476 = vmatprep.mubr.f32.mxu0 0.0
        %v1477 = vand.u32 %v235, 4294901760
        %1478 = vmatmul.mubr.f32.gmra.mrb[0].mxu0 %v1477
        %v1479 = vpop.f32.mrb[0].mxu0
        %v1480 = vadd.f32 %v1303, %v1479
        %v1481 = vpop.f32.mrb[0].mxu0
        %1482 = vmatprep.mubr.f32.mxu0 0.0
        %v1483 = vand.u32 %v236, 4294901760
        %1484 = vmatmul.mubr.f32.gmra.mrb[0].mxu0 %v1483
        %v1485 = vpop.f32.mrb[0].mxu0
        %v1486 = vadd.f32 %v1309, %v1485
        %v1487 = vpop.f32.mrb[0].mxu0
        %1488 = vmatprep.mubr.f32.mxu0 0.0
        %v1489 = vand.u32 %v237, 4294901760
        %1490 = vmatmul.mubr.f32.gmra.mrb[0].mxu0 %v1489
        %v1491 = vpop.f32.mrb[0].mxu0
        %v1492 = vadd.f32 %v1315, %v1491
        %v1493 = vpop.f32.mrb[0].mxu0
        %1494 = vmatprep.mubr.f32.mxu0 0.0
        %v1495 = vand.u32 %v238, 4294901760
        %1496 = vmatmul.mubr.f32.gmra.mrb[0].mxu0 %v1495
        %v1497 = vpop.f32.mrb[0].mxu0
        %v1498 = vadd.f32 %v1321, %v1497
        %v1499 = vpop.f32.mrb[0].mxu0
        %1500 = vmatprep.mubr.f32.mxu0 0.0
        %v1501 = vand.u32 %v239, 4294901760
        %1502 = vmatmul.mubr.f32.gmra.mrb[0].mxu0 %v1501
        %v1503 = vpop.f32.mrb[0].mxu0
        %v1504 = vadd.f32 %v1327, %v1503
        %v1505 = vpop.f32.mrb[0].mxu0
        %1506 = vmatprep.mubr.f32.mxu0 0.0
        %v1507 = vand.u32 %v240, 4294901760
        %1508 = vmatmul.mubr.f32.gmra.mrb[0].mxu0 %v1507
        %v1509 = vpop.f32.mrb[0].mxu0
        %v1510 = vadd.f32 %v1333, %v1509
        %v1511 = vpop.f32.mrb[0].mxu0
        %1512 = vmatprep.mubr.f32.mxu0 0.0
        %v1513 = vand.u32 %v241, 4294901760
        %1514 = vmatmul.mubr.f32.gmra.mrb[0].mxu0 %v1513
        %v1515 = vpop.f32.mrb[0].mxu0
        %v1516 = vadd.f32 %v1339, %v1515
        %v1517 = vpop.f32.mrb[0].mxu0
        %1518 = vmatprep.mubr.f32.mxu0 0.0
        %v1519 = vand.u32 %v242, 4294901760
        %1520 = vmatmul.mubr.f32.gmra.mrb[0].mxu0 %v1519
        %v1521 = vpop.f32.mrb[0].mxu0
        %v1522 = vadd.f32 %v1345, %v1521
        %v1523 = vpop.f32.mrb[0].mxu0
        %1524 = vmatprep.mubr.f32.mxu0 0.0
        %v1525 = vand.u32 %v243, 4294901760
        %1526 = vmatmul.mubr.f32.gmra.mrb[0].mxu0 %v1525
        %v1527 = vpop.f32.mrb[0].mxu0
        %v1528 = vadd.f32 %v1351, %v1527
        %v1529 = vpop.f32.mrb[0].mxu0
        %1530 = vmatprep.mubr.f32.mxu0 0.0
        %v1531 = vand.u32 %v244, 4294901760
        %1532 = vmatmul.mubr.f32.gmra.mrb[0].mxu0 %v1531
        %v1533 = vpop.f32.mrb[0].mxu0
        %v1534 = vadd.f32 %v1357, %v1533
        %v1535 = vpop.f32.mrb[0].mxu0
        %1536 = vmatprep.mubr.f32.mxu0 0.0
        %v1537 = vand.u32 %v245, 4294901760
        %1538 = vmatmul.mubr.f32.gmra.mrb[0].mxu0 %v1537
        %v1539 = vpop.f32.mrb[0].mxu0
        %v1540 = vadd.f32 %v1363, %v1539
        %v1541 = vpop.f32.mrb[0].mxu0
        %1542 = vmatprep.mubr.f32.mxu0 0.0
        %v1543 = vand.u32 %v246, 4294901760
        %1544 = vmatmul.mubr.f32.gmra.mrb[0].mxu0 %v1543
        %v1545 = vpop.f32.mrb[0].mxu0
        %v1546 = vadd.f32 %v1369, %v1545
        %v1547 = vpop.f32.mrb[0].mxu0
        %1548 = vmatprep.mubr.f32.mxu0 0.0
        %v1549 = vand.u32 %v247, 4294901760
        %1550 = vmatmul.mubr.f32.gmra.mrb[0].mxu0 %v1549
        %v1551 = vpop.f32.mrb[0].mxu0
        %v1552 = vadd.f32 %v1375, %v1551
        %v1553 = vpop.f32.mrb[0].mxu0
        %1554 = vdwg.mxu0
        %v1555 = vlaneseq
        %v1556 = vshrl.u32 %v1555, 7
        %v1557 = vsub.s32 1, %v1556
        %v1558 = vrot.slane %v264, %v1557
        %v1559 = vmul.f32 %v1558, %v232
        %v1560 = vmul.f32 %v1558, %v233
        %v1561 = vmul.f32 %v1558, %v234
        %v1562 = vmul.f32 %v1558, %v235
        %v1563 = vmul.f32 %v1558, %v236
        %v1564 = vmul.f32 %v1558, %v237
        %v1565 = vmul.f32 %v1558, %v238
        %v1566 = vmul.f32 %v1558, %v239
        %v1567 = vmul.f32 %v1558, %v240
        %v1568 = vmul.f32 %v1558, %v241
        %v1569 = vmul.f32 %v1558, %v242
        %v1570 = vmul.f32 %v1558, %v243
        %v1571 = vmul.f32 %v1558, %v244
        %v1572 = vmul.f32 %v1558, %v245
        %v1573 = vmul.f32 %v1558, %v246
        %v1574 = vmul.f32 %v1558, %v247
        %v1575 = vadd.f32 %v1462, %v1559
        %v1576 = vadd.f32 %v1468, %v1560
        %v1577 = vadd.f32 %v1474, %v1561
        %v1578 = vadd.f32 %v1480, %v1562
        %v1579 = vadd.f32 %v1486, %v1563
        %v1580 = vadd.f32 %v1492, %v1564
        %v1581 = vadd.f32 %v1498, %v1565
        %v1582 = vadd.f32 %v1504, %v1566
        %v1583 = vadd.f32 %v1510, %v1567
        %v1584 = vadd.f32 %v1516, %v1568
        %v1585 = vadd.f32 %v1522, %v1569
        %v1586 = vadd.f32 %v1528, %v1570
        %v1587 = vadd.f32 %v1534, %v1571
        %v1588 = vadd.f32 %v1540, %v1572
        %v1589 = vadd.f32 %v1546, %v1573
        %v1590 = vadd.f32 %v1552, %v1574
        %1591 = vadd.xlane.f32.xlu0 %v1575
        %v1592 = vpop.xlane.xlu0 %1591
        %1593 = vadd.xlane.f32.xlu0 %v1576
        %v1594 = vpop.xlane.xlu0 %1593
        %1595 = vadd.xlane.f32.xlu0 %v1577
        %v1596 = vpop.xlane.xlu0 %1595
        %1597 = vadd.xlane.f32.xlu0 %v1578
        %v1598 = vpop.xlane.xlu0 %1597
        %1599 = vadd.xlane.f32.xlu0 %v1579
        %v1600 = vpop.xlane.xlu0 %1599
        %1601 = vadd.xlane.f32.xlu0 %v1580
        %v1602 = vpop.xlane.xlu0 %1601
        %1603 = vadd.xlane.f32.xlu0 %v1581
        %v1604 = vpop.xlane.xlu0 %1603
        %1605 = vadd.xlane.f32.xlu0 %v1582
        %v1606 = vpop.xlane.xlu0 %1605
        %1607 = vadd.xlane.f32.xlu0 %v1583
        %v1608 = vpop.xlane.xlu0 %1607
        %1609 = vadd.xlane.f32.xlu0 %v1584
        %v1610 = vpop.xlane.xlu0 %1609
        %1611 = vadd.xlane.f32.xlu0 %v1585
        %v1612 = vpop.xlane.xlu0 %1611
        %1613 = vadd.xlane.f32.xlu0 %v1586
        %v1614 = vpop.xlane.xlu0 %1613
        %1615 = vadd.xlane.f32.xlu0 %v1587
        %v1616 = vpop.xlane.xlu0 %1615
        %1617 = vadd.xlane.f32.xlu0 %v1588
        %v1618 = vpop.xlane.xlu0 %1617
        %1619 = vadd.xlane.f32.xlu0 %v1589
        %v1620 = vpop.xlane.xlu0 %1619
        %1621 = vadd.xlane.f32.xlu0 %v1590
        %v1622 = vpop.xlane.xlu0 %1621
        %v1623 = vmul.f32 %v1575, %v1575
        %v1624 = vmul.f32 %v1576, %v1576
        %v1625 = vmul.f32 %v1577, %v1577
        %v1626 = vmul.f32 %v1578, %v1578
        %v1627 = vmul.f32 %v1579, %v1579
        %v1628 = vmul.f32 %v1580, %v1580
        %v1629 = vmul.f32 %v1581, %v1581
        %v1630 = vmul.f32 %v1582, %v1582
        %v1631 = vmul.f32 %v1583, %v1583
        %v1632 = vmul.f32 %v1584, %v1584
        %v1633 = vmul.f32 %v1585, %v1585
        %v1634 = vmul.f32 %v1586, %v1586
        %v1635 = vmul.f32 %v1587, %v1587
        %v1636 = vmul.f32 %v1588, %v1588
        %v1637 = vmul.f32 %v1589, %v1589
        %v1638 = vmul.f32 %v1590, %v1590
        %1639 = vadd.xlane.f32.xlu0 %v1623
        %v1640 = vpop.xlane.xlu0 %1639
        %1641 = vadd.xlane.f32.xlu0 %v1624
        %v1642 = vpop.xlane.xlu0 %1641
        %1643 = vadd.xlane.f32.xlu0 %v1625
        %v1644 = vpop.xlane.xlu0 %1643
        %1645 = vadd.xlane.f32.xlu0 %v1626
        %v1646 = vpop.xlane.xlu0 %1645
        %1647 = vadd.xlane.f32.xlu0 %v1627
        %v1648 = vpop.xlane.xlu0 %1647
        %1649 = vadd.xlane.f32.xlu0 %v1628
        %v1650 = vpop.xlane.xlu0 %1649
        %1651 = vadd.xlane.f32.xlu0 %v1629
        %v1652 = vpop.xlane.xlu0 %1651
        %1653 = vadd.xlane.f32.xlu0 %v1630
        %v1654 = vpop.xlane.xlu0 %1653
        %1655 = vadd.xlane.f32.xlu0 %v1631
        %v1656 = vpop.xlane.xlu0 %1655
        %1657 = vadd.xlane.f32.xlu0 %v1632
        %v1658 = vpop.xlane.xlu0 %1657
        %1659 = vadd.xlane.f32.xlu0 %v1633
        %v1660 = vpop.xlane.xlu0 %1659
        %1661 = vadd.xlane.f32.xlu0 %v1634
        %v1662 = vpop.xlane.xlu0 %1661
        %1663 = vadd.xlane.f32.xlu0 %v1635
        %v1664 = vpop.xlane.xlu0 %1663
        %1665 = vadd.xlane.f32.xlu0 %v1636
        %v1666 = vpop.xlane.xlu0 %1665
        %1667 = vadd.xlane.f32.xlu0 %v1637
        %v1668 = vpop.xlane.xlu0 %1667
        %1669 = vadd.xlane.f32.xlu0 %v1638
        %v1670 = vpop.xlane.xlu0 %1669
        %v1671 = vmul.f32 %v1592, 0.0078125
        %v1672 = vmul.f32 %v1594, 0.0078125
        %v1673 = vmul.f32 %v1596, 0.0078125
        %v1674 = vmul.f32 %v1598, 0.0078125
        %v1675 = vmul.f32 %v1600, 0.0078125
        %v1676 = vmul.f32 %v1602, 0.0078125
        %v1677 = vmul.f32 %v1604, 0.0078125
        %v1678 = vmul.f32 %v1606, 0.0078125
        %v1679 = vmul.f32 %v1608, 0.0078125
        %v1680 = vmul.f32 %v1610, 0.0078125
        %v1681 = vmul.f32 %v1612, 0.0078125
        %v1682 = vmul.f32 %v1614, 0.0078125
        %v1683 = vmul.f32 %v1616, 0.0078125
        %v1684 = vmul.f32 %v1618, 0.0078125
        %v1685 = vmul.f32 %v1620, 0.0078125
        %v1686 = vmul.f32 %v1622, 0.0078125
        %v1687 = vmul.f32 %v1640, 0.0078125
        %v1688 = vmul.f32 %v1642, 0.0078125
        %v1689 = vmul.f32 %v1644, 0.0078125
        %v1690 = vmul.f32 %v1646, 0.0078125
        %v1691 = vmul.f32 %v1648, 0.0078125
        %v1692 = vmul.f32 %v1650, 0.0078125
        %v1693 = vmul.f32 %v1652, 0.0078125
        %v1694 = vmul.f32 %v1654, 0.0078125
        %v1695 = vmul.f32 %v1656, 0.0078125
        %v1696 = vmul.f32 %v1658, 0.0078125
        %v1697 = vmul.f32 %v1660, 0.0078125
        %v1698 = vmul.f32 %v1662, 0.0078125
        %v1699 = vmul.f32 %v1664, 0.0078125
        %v1700 = vmul.f32 %v1666, 0.0078125
        %v1701 = vmul.f32 %v1668, 0.0078125
        %v1702 = vmul.f32 %v1670, 0.0078125
        %v1703 = vmul.f32 %v1671, %v1671
        %v1704 = vmul.f32 %v1672, %v1672
        %v1705 = vmul.f32 %v1673, %v1673
        %v1706 = vmul.f32 %v1674, %v1674
        %v1707 = vmul.f32 %v1675, %v1675
        %v1708 = vmul.f32 %v1676, %v1676
        %v1709 = vmul.f32 %v1677, %v1677
        %v1710 = vmul.f32 %v1678, %v1678
        %v1711 = vmul.f32 %v1679, %v1679
        %v1712 = vmul.f32 %v1680, %v1680
        %v1713 = vmul.f32 %v1681, %v1681
        %v1714 = vmul.f32 %v1682, %v1682
        %v1715 = vmul.f32 %v1683, %v1683
        %v1716 = vmul.f32 %v1684, %v1684
        %v1717 = vmul.f32 %v1685, %v1685
        %v1718 = vmul.f32 %v1686, %v1686
        %v1719 = vsub.f32 %v1687, %v1703
        %v1720 = vsub.f32 %v1688, %v1704
        %v1721 = vsub.f32 %v1689, %v1705
        %v1722 = vsub.f32 %v1690, %v1706
        %v1723 = vsub.f32 %v1691, %v1707
        %v1724 = vsub.f32 %v1692, %v1708
        %v1725 = vsub.f32 %v1693, %v1709
        %v1726 = vsub.f32 %v1694, %v1710
        %v1727 = vsub.f32 %v1695, %v1711
        %v1728 = vsub.f32 %v1696, %v1712
        %v1729 = vsub.f32 %v1697, %v1713
        %v1730 = vsub.f32 %v1698, %v1714
        %v1731 = vsub.f32 %v1699, %v1715
        %v1732 = vsub.f32 %v1700, %v1716
        %v1733 = vsub.f32 %v1701, %v1717
        %v1734 = vsub.f32 %v1702, %v1718
        %v1735 = vadd.f32 %v1719, 1e-05
        %v1736 = vadd.f32 %v1720, 1e-05
        %v1737 = vadd.f32 %v1721, 1e-05
        %v1738 = vadd.f32 %v1722, 1e-05
        %v1739 = vadd.f32 %v1723, 1e-05
        %v1740 = vadd.f32 %v1724, 1e-05
        %v1741 = vadd.f32 %v1725, 1e-05
        %v1742 = vadd.f32 %v1726, 1e-05
        %v1743 = vadd.f32 %v1727, 1e-05
        %v1744 = vadd.f32 %v1728, 1e-05
        %v1745 = vadd.f32 %v1729, 1e-05
        %v1746 = vadd.f32 %v1730, 1e-05
        %v1747 = vadd.f32 %v1731, 1e-05
        %v1748 = vadd.f32 %v1732, 1e-05
        %v1749 = vadd.f32 %v1733, 1e-05
        %v1750 = vadd.f32 %v1734, 1e-05
        %v1751 = vrsqrt.pop %v1735
        %v1752 = vrsqrt.pop %v1736
        %v1753 = vrsqrt.pop %v1737
        %v1754 = vrsqrt.pop %v1738
        %v1755 = vrsqrt.pop %v1739
        %v1756 = vrsqrt.pop %v1740
        %v1757 = vrsqrt.pop %v1741
        %v1758 = vrsqrt.pop %v1742
        %v1759 = vrsqrt.pop %v1743
        %v1760 = vrsqrt.pop %v1744
        %v1761 = vrsqrt.pop %v1745
        %v1762 = vrsqrt.pop %v1746
        %v1763 = vrsqrt.pop %v1747
        %v1764 = vrsqrt.pop %v1748
        %v1765 = vrsqrt.pop %v1749
        %v1766 = vrsqrt.pop %v1750
        %v1767 = vsub.f32 %v1575, %v1671
        %v1768 = vsub.f32 %v1576, %v1672
        %v1769 = vsub.f32 %v1577, %v1673
        %v1770 = vsub.f32 %v1578, %v1674
        %v1771 = vsub.f32 %v1579, %v1675
        %v1772 = vsub.f32 %v1580, %v1676
        %v1773 = vsub.f32 %v1581, %v1677
        %v1774 = vsub.f32 %v1582, %v1678
        %v1775 = vsub.f32 %v1583, %v1679
        %v1776 = vsub.f32 %v1584, %v1680
        %v1777 = vsub.f32 %v1585, %v1681
        %v1778 = vsub.f32 %v1586, %v1682
        %v1779 = vsub.f32 %v1587, %v1683
        %v1780 = vsub.f32 %v1588, %v1684
        %v1781 = vsub.f32 %v1589, %v1685
        %v1782 = vsub.f32 %v1590, %v1686
        %v1783 = vlaneseq
        %v1784 = vshrl.u32 %v1783, 7
        %v1785 = vsub.s32 2, %v1784
        %v1786 = vrot.slane %v264, %v1785
        %v1787 = vmul.f32 %v1751, %v1786
        %v1788 = vmul.f32 %v1752, %v1786
        %v1789 = vmul.f32 %v1753, %v1786
        %v1790 = vmul.f32 %v1754, %v1786
        %v1791 = vmul.f32 %v1755, %v1786
        %v1792 = vmul.f32 %v1756, %v1786
        %v1793 = vmul.f32 %v1757, %v1786
        %v1794 = vmul.f32 %v1758, %v1786
        %v1795 = vmul.f32 %v1759, %v1786
        %v1796 = vmul.f32 %v1760, %v1786
        %v1797 = vmul.f32 %v1761, %v1786
        %v1798 = vmul.f32 %v1762, %v1786
        %v1799 = vmul.f32 %v1763, %v1786
        %v1800 = vmul.f32 %v1764, %v1786
        %v1801 = vmul.f32 %v1765, %v1786
        %v1802 = vmul.f32 %v1766, %v1786
        %v1803 = vmul.f32 %v1767, %v1787
        %v1804 = vmul.f32 %v1768, %v1788
        %v1805 = vmul.f32 %v1769, %v1789
        %v1806 = vmul.f32 %v1770, %v1790
        %v1807 = vmul.f32 %v1771, %v1791
        %v1808 = vmul.f32 %v1772, %v1792
        %v1809 = vmul.f32 %v1773, %v1793
        %v1810 = vmul.f32 %v1774, %v1794
        %v1811 = vmul.f32 %v1775, %v1795
        %v1812 = vmul.f32 %v1776, %v1796
        %v1813 = vmul.f32 %v1777, %v1797
        %v1814 = vmul.f32 %v1778, %v1798
        %v1815 = vmul.f32 %v1779, %v1799
        %v1816 = vmul.f32 %v1780, %v1800
        %v1817 = vmul.f32 %v1781, %v1801
        %v1818 = vmul.f32 %v1782, %v1802
        %v1819 = vlaneseq
        %v1820 = vshrl.u32 %v1819, 7
        %v1821 = vsub.s32 3, %v1820
        %v1822 = vrot.slane %v264, %v1821
        %v1823 = vadd.f32 %v1803, %v1822
        %v1824 = vadd.f32 %v1804, %v1822
        %v1825 = vadd.f32 %v1805, %v1822
        %v1826 = vadd.f32 %v1806, %v1822
        %v1827 = vadd.f32 %v1807, %v1822
        %v1828 = vadd.f32 %v1808, %v1822
        %v1829 = vadd.f32 %v1809, %v1822
        %v1830 = vadd.f32 %v1810, %v1822
        %v1831 = vadd.f32 %v1811, %v1822
        %v1832 = vadd.f32 %v1812, %v1822
        %v1833 = vadd.f32 %v1813, %v1822
        %v1834 = vadd.f32 %v1814, %v1822
        %v1835 = vadd.f32 %v1815, %v1822
        %v1836 = vadd.f32 %v1816, %v1822
        %v1837 = vadd.f32 %v1817, %v1822
        %v1838 = vadd.f32 %v1818, %v1822
        %1839 = vst [vmem:[%s221] sm:$0xff] %v1823
        %1840 = vst [vmem:[%s221 + $0x8] sm:$0xff] %v1824
        %1841 = vst [vmem:[%s221 + $0x10] sm:$0xff] %v1825
        %1842 = vst [vmem:[%s221 + $0x18] sm:$0xff] %v1826
        %1843 = vst [vmem:[%s221 + $0x20] sm:$0xff] %v1827
        %1844 = vst [vmem:[%s221 + $0x28] sm:$0xff] %v1828
        %1845 = vst [vmem:[%s221 + $0x30] sm:$0xff] %v1829
        %1846 = vst [vmem:[%s221 + $0x38] sm:$0xff] %v1830
        %1847 = vst [vmem:[%s221 + $0x40] sm:$0xff] %v1831
        %1848 = vst [vmem:[%s221 + $0x48] sm:$0xff] %v1832
        %1849 = vst [vmem:[%s221 + $0x50] sm:$0xff] %v1833
        %1850 = vst [vmem:[%s221 + $0x58] sm:$0xff] %v1834
        %1851 = vst [vmem:[%s221 + $0x60] sm:$0xff] %v1835
        %1852 = vst [vmem:[%s221 + $0x68] sm:$0xff] %v1836
        %1853 = vst [vmem:[%s221 + $0x70] sm:$0xff] %v1837
        %1854 = vst [vmem:[%s221 + $0x78] sm:$0xff] %v1838
        %s1855 = sand.u32 %s97, 1
        %s1856 = scalar_lea.sflag [#allocation4], %s1855
        %s1857 = sand.u32 %s97, 1
        %s1858 = smul.addr %s1857, 128
        %s1859 = scalar_lea.vmem [#allocation8], %s1858
        // Predicated region
        $region45: #{tpu_custom_call.1} parent=31 // pred_check
          %p1860 = pneg %p107
        $region46: #{tpu_custom_call.1} parent=31 // pred_check_branch
          %1862 = sbr.rel (%p1860) target = $region48
        $region47: #{tpu_custom_call.1} parent=31 // pred_region
          %s1863 = smul.u32 16, %s21
          %s1864 = ssub.s32 25, %s1863
          %p1865 = scmp.lt.s32.totalorder %s1864, 16
          %s1866 = scalar_select %p1865, %s1864, 16
          %s1867 = smul.u32 128, %s1866
          %s1869 = ssub.s32 2048, %s1867
          %1870 = vsyncadd %s1856, %s1869
          %p1871 = scmp.ne.s32.totalorder 0, %s1867
          %s1872 = smul.addr %s1863, 128
          %s1873 = scalar_lea.hbm %s3, %s1872
          %s1874 = smul.u32 8, %s1866
          %s1875 = sshll.u32 %s1859, 4
          %s1876 = int_to_ptr.vmem [resolvable:$true] %s1875
          %s1877 = sshll.u32 %s1874, 4
          %1881 = dma.vmem_to_hbm [thread:$0]  (%p1871), %s1876, %s1877, %s1873, %s1856, 128, 128, 8
        $region48: #{tpu_custom_call.1} parent=31 // pred_fallthru
          _
      $region32: #{tpu_custom_call.1} parent=5 // pred_fallthru
        _
      %p1882 = scmp.le.s32.totalorder 2, %s16
      // Predicated region
      $region49: #{tpu_custom_call.1} parent=5 // pred_check
        %p1883 = pneg %p1882
      $region50: #{tpu_custom_call.1} parent=5 // pred_check_branch
        %1885 = sbr.rel (%p1883) target = $region52
      $region51: #{tpu_custom_call.1} parent=5 // pred_region
        %s1886 = ssub.s32 %s16, 2
        // Predicated region
        $region53: #{tpu_custom_call.1} parent=51 // pred_check
          %p1887 = pneg %p113
        $region54: #{tpu_custom_call.1} parent=51 // pred_check_branch
          %1889 = sbr.rel (%p1887) target = $region56
        $region55: #{tpu_custom_call.1} parent=51 // pred_region
          %s1890 = sand.u32 %s98, 1
          %s1891 = scalar_lea.sflag [#allocation4], %s1890
          %s1892 = sand.u32 %s98, 1
          %s1893 = smul.addr %s1892, 128
          %s1894 = scalar_lea.vmem [#allocation8], %s1893
          %1895 = dma.done %s1891, 2048
        $region56: #{tpu_custom_call.1} parent=51 // pred_fallthru
          _
      $region52: #{tpu_custom_call.1} parent=5 // pred_fallthru
        _
    $region6: #{tpu_custom_call.1} parent=1 // loop_footer
      %s20 = sadd.s32 1, %s16
    $region7: #{tpu_custom_call.1} parent=1 // loop_footer_branch
      %15 = sbr.rel target = $region3
    $region8: #{tpu_custom_call.1} parent=1 // loop_exit
      _
    %1896 = vsyncpa [#allocation3], 1
    %s1897 = scalar_lea.sflag [#allocation3], 1
    %1898 = vsyncpa %s1897, 1
    %1899 = vsyncpa [#allocation6], 1
    %1900 = vsyncpa [#allocation4], 1
    %s1901 = scalar_lea.sflag [#allocation4], 1
    %1902 = vsyncpa %s1901, 1

</llo_original>
